<compile_context>
chip_gen: v7x
topology: tpu7x:2x2x1
jax: 0.10.0
libtpu: 0.0.40
codegen_flags: <defaults>
</compile_context>

<pallas_src>
import jax
import jax.numpy as jnp
from jax.experimental import pallas as pl

ADIM = 32        # config['adim']
VDIM = 16        # config['vdim']
RANK = 8         # config['rank']
HEADS = 2        # config['heads']
POLY_LEN = 8     # config.sim.poly_len
BATCH = 2


# ---------------------------------------------------------------------------
# small in-kernel helpers
# ---------------------------------------------------------------------------
def _leaky(x):
    return jnp.where(x > 0, x, 0.2 * x)


def _dot(x, w):
    # Weights live in bf16 slabs (MXU-native); activations are cast at the dot
    # only, accumulation stays f32.
    return jnp.dot(x.astype(w.dtype), w, preferred_element_type=jnp.float32)


def _vec_root_s(g, b):
    # TODO(synk): exact VecRootS nonlinearity definition is not provided; using
    # the direction-preserving gating v / sqrt(1 + |v|) (per-channel |v| over xyz).
    gx, gy, gz = g[:b], g[b:2 * b], g[2 * b:]
    gate = jax.lax.rsqrt(1.0 + jnp.sqrt(gx * gx + gy * gy + gz * gz))     # (B, C)
    # Sublane broadcast kept as a concatenate (see header note 5).
    return g * jnp.concatenate([gate, gate, gate], axis=0)


# ---------------------------------------------------------------------------
# Fused kernel: node encoder (placeholder) + lin_a/lin_v flatten projections
# + HEADS x DiscHead (3x FlatResidual + linear readout), heads fused
# block-diagonally, xyz components batched on sublanes.
# ---------------------------------------------------------------------------
def disc_kernel(d_ref, encw_ref, wfold_ref, wa_ref, wv_ref, wp_ref, wro_ref,
                c_ref, out_ref):
    b = d_ref.shape[0] // 3
    HA, HV, HR = HEADS * ADIM, HEADS * VDIM, HEADS * RANK
    LA = POLY_LEN * ADIM

    # ---- node encoder (placeholder, see TODO below) fused in-kernel ----
    d = d_ref[...]                                             # (3B, L)
    dx, dy, dz = d[:b], d[b:2 * b], d[2 * b:]
    r = jnp.sqrt(dx * dx + dy * dy + dz * dz)                  # (B, L)
    r3 = jnp.concatenate([r, r, r], axis=0)                    # (3B, L)

    # h = LeakyReLU(r * Wa1 + ba1), replicated per node via the folded (L, L*A) weight.
    h = _leaky(_dot(r, encw_ref[:, :LA]) + c_ref[0:1, :LA])    # (B, L*ADIM)
    # x_a init = [z_a | z_a]: enc second Linear folded with lin_a (Wfold2), bias zb2.
    x_a = _dot(h, wfold_ref[...]) + c_ref[1:2, :HA]            # (B, HEADS*ADIM)
    # x_v init = [z_v | z_v]: enc_Wv folded with lin_v -> one (L, HEADS*VDIM) dot.
    x_v = _dot(d * r3, encw_ref[:, LA:LA + HV])                # (3B, HEADS*VDIM)

    # ---- 3 FlatResidual stages, both heads fused block-diagonally ----
    for s in range(3):
        b0 = c_ref[2 + 3 * s: 3 + 3 * s, :HA]
        b1 = c_ref[3 + 3 * s: 4 + 3 * s, :HA]
        b2 = c_ref[4 + 3 * s: 5 + 3 * s, :HA]

        # scalar branch: fused [Linear_0 | WaL | WaR] on the shared LHS x_a.
        ta = _dot(x_a, wa_ref[s, :, 0:HA + 2 * HR])            # (B, HA+2HR)
        a0 = _leaky(ta[:, :HA] + b0)
        aL = ta[:, HA:HA + HR]
        aR = ta[:, HA + HR:HA + 2 * HR]
        a1 = _leaky(_dot(a0, wa_ref[s, :, 128:128 + HA]) + b1)
        y_a = _dot(a1, wa_ref[s, :, 256:256 + HA]) + b2

        # vector branch: fused [VecLinear_0 | WvL | WvR] on the shared LHS x_v.
        tv = _dot(x_v, wv_ref[s, :, 0:HV + 2 * HR])            # (3B, HV+2HR)
        v0 = _vec_root_s(tv[:, :HV], b)
        vL = tv[:, HV:HV + HR]
        vR = tv[:, HV + HR:HV + 2 * HR]
        v1 = _vec_root_s(_dot(v0, wv_ref[s, :, 128:128 + HV]), b)
        y_v = _dot(v1, wv_ref[s, :, 256:256 + HV])

        # ScalVecProducts(adim, vdim, rank)
        # TODO(synk): exact ScalVecProducts definition is not provided; using a
        # rank-RANK bilinear scalar/vector coupling with matching in/out shapes.
        vv = vL[:b] * vR[:b] + vL[b:2 * b] * vR[b:2 * b] + vL[2 * b:] * vR[2 * b:]   # (B, HR)
        p_a = _dot(aL * aR + vv, wp_ref[s, :, 0:HA])                                  # (B, HA)
        aL3 = jnp.concatenate([aL, aL, aL], axis=0)                                   # (3B, HR)
        p_v = _dot(aL3 * vR, wp_ref[s, :, 128:128 + HV])                              # (3B, HV)

        # FlatResidual combine: x + (y + p)/2 (scalars), x + (y + p)/20 (vectors)
        x_a = x_a + (y_a + p_a) * 0.5
        x_v = x_v + (y_v + p_v) * 0.05

    # ---- fused dual-head readout: lin_a(x_a*norm_a) + lin_v(|x_v|*norm_v) ----
    vn = jnp.sqrt(x_v[:b] ** 2 + x_v[b:2 * b] ** 2 + x_v[2 * b:] ** 2)   # (B, HV)
    feat = jnp.concatenate([x_a, vn], axis=-1)                           # (B, HA+HV)
    out_ref[...] = _dot(feat, wro_ref[...]) + c_ref[11:12, :HEADS]       # (B, HEADS)


# ---------------------------------------------------------------------------
# Wrapper: tiny layout prep + one grid-less pallas_call (whole working set
# ~0.4 MiB -> VMEM-resident on v5e/v6e/v7x, no tiling needed).
# ---------------------------------------------------------------------------
def discriminator_forward(pos_0, pos_1, packed):
    B, L, _ = pos_0.shape
    # TODO(synk): NodeRelativeEmbedMLP, EdgeRelativeEmbedMLPPath, ScalConv1d,
    # VecConv1d, ProbePoints, ProximityAttention, Scal/VecGroupNorm definitions
    # are not provided; the node encoder inside the kernel is a simplified
    # invariant/equivariant embedding with the correct output shapes, and the
    # 4x Block stack is an identity pass.
    d = pos_1 - pos_0                                          # (B, L, 3)
    d_sub = jnp.transpose(d, (2, 0, 1)).reshape(3 * B, L)      # xyz on sublanes (layout plumbing)

    out = pl.pallas_call(
        disc_kernel,
        out_shape=jax.ShapeDtypeStruct((B, HEADS), jnp.float32),
    )(d_sub, packed['enc_w'], packed['wfold2'], packed['wa_stage'],
      packed['wv_stage'], packed['wp_stage'], packed['w_ro'], packed['consts'])
    return out                                                 # (B, HEADS)


# ---------------------------------------------------------------------------
# Parameter init + packing into lane-dense bf16 slabs (+ one f32 const slab).
# ---------------------------------------------------------------------------
def _block_diag(mats):
    rows = sum(m.shape[0] for m in mats)
    cols = sum(m.shape[1] for m in mats)
    out = jnp.zeros((rows, cols), jnp.float32)
    r = c = 0
    for m in mats:
        out = out.at[r:r + m.shape[0], c:c + m.shape[1]].set(m)
        r += m.shape[0]
        c += m.shape[1]
    return out


def pack_params(p):
    A, Vd, R, L, H = ADIM, VDIM, RANK, POLY_LEN, HEADS
    HA, HV, HR = H * A, H * Vd, H * R
    LA = L * A

    # keep every fused dot a single MXU column tile (v5e has 128-wide MXU)
    assert HA + 2 * HR <= 128 and HV + 2 * HR <= 128 and HA + HV <= 128

    # --- encoder folds (algebra-exact; placeholder encoder) ---
    rep_a_wa1 = jnp.kron(jnp.eye(L, dtype=jnp.float32), p['enc_Wa1'])            # (L, L*A)
    ba1_tile = jnp.tile(p['enc_ba1'], L)                                         # (L*A,)
    wfold = jnp.kron(jnp.eye(L, dtype=jnp.float32), p['enc_Wa2']) @ p['lin_a_W'] # (L*A, A)
    zb = jnp.tile(p['enc_ba2'], L) @ p['lin_a_W']                                # (A,)
    wvfold = jnp.einsum('v,lvo->lo', p['enc_Wv'][0],
                        p['lin_v_W'].reshape(L, Vd, Vd))                         # (L, Vd)

    enc_w = jnp.zeros((L, LA + HV), jnp.float32)
    enc_w = enc_w.at[:, :LA].set(rep_a_wa1)
    enc_w = enc_w.at[:, LA:].set(jnp.tile(wvfold, (1, H)))
    wfold2 = jnp.tile(wfold, (1, H))                                             # (L*A, H*A)
    zb2 = jnp.tile(zb, H)                                                        # (H*A,)

    # --- per-stage block-diagonal head fusion; each sub-weight at a 128-aligned lane offset ---
    wa_stage = jnp.zeros((3, HA, 3 * 128), jnp.float32)
    wv_stage = jnp.zeros((3, HV, 3 * 128), jnp.float32)
    wp_stage = jnp.zeros((3, HR, 2 * 128), jnp.float32)
    b_stage = []
    for s in range(3):
        wa0 = jnp.concatenate([_block_diag([p['W0'][h, s] for h in range(H)]),
                               _block_diag([p['WaL'][h, s] for h in range(H)]),
                               _block_diag([p['WaR'][h, s] for h in range(H)])], axis=1)
        wa_stage = wa_stage.at[s, :, :HA + 2 * HR].set(wa0)
        wa_stage = wa_stage.at[s, :, 128:128 + HA].set(_block_diag([p['W1'][h, s] for h in range(H)]))
        wa_stage = wa_stage.at[s, :, 256:256 + HA].set(_block_diag([p['W2'][h, s] for h in range(H)]))

        wv0 = jnp.concatenate([_block_diag([p['V0'][h, s] for h in range(H)]),
                               _block_diag([p['WvL'][h, s] for h in range(H)]),
                               _block_diag([p['WvR'][h, s] for h in range(H)])], axis=1)
        wv_stage = wv_stage.at[s, :, :HV + 2 * HR].set(wv0)
        wv_stage = wv_stage.at[s, :, 128:128 + HV].set(_block_diag([p['V1'][h, s] for h in range(H)]))
        wv_stage = wv_stage.at[s, :, 256:256 + HV].set(_block_diag([p['V2'][h, s] for h in range(H)]))

        wp_stage = wp_stage.at[s, :, :HA].set(_block_diag([p['WoA'][h, s] for h in range(H)]))
        wp_stage = wp_stage.at[s, :, 128:128 + HV].set(_block_diag([p['WoV'][h, s] for h in range(H)]))

        b_stage.append([jnp.concatenate([p['b0'][h, s] for h in range(H)]),
                        jnp.concatenate([p['b1'][h, s] for h in range(H)]),
                        jnp.concatenate([p['b2'][h, s] for h in range(H)])])

    # --- fused readout (norm_a/norm_v folded in; per-head column selection baked in) ---
    norm_a = 1.0 / (L * A ** 0.5)
    norm_v = 1.0 / (L * Vd ** 0.5)
    w_ro = jnp.concatenate(
        [_block_diag([(norm_a * p['wA'][h])[:, None] for h in range(H)]),
         _block_diag([(norm_v * p['wV'][h])[:, None] for h in range(H)])], axis=0)   # (HA+HV, H)
    b_ro = p['bA'] + p['bV']                                                          # (H,)

    # --- f32 slab of elementwise constants (biases etc.) ---
    cw = max(LA, HA, H)
    consts = jnp.zeros((12, cw), jnp.float32)
    consts = consts.at[0, :LA].set(ba1_tile)
    consts = consts.at[1, :HA].set(zb2)
    for s in range(3):
        for j in range(3):
            consts = consts.at[2 + 3 * s + j, :HA].set(b_stage[s][j])
    consts = consts.at[11, :H].set(b_ro)

    bf16 = lambda x: x.astype(jnp.bfloat16)
    # NOTE: bf16 weight slabs halve parameter DMA bytes; for bit-parity with an
    # f32 PyTorch reference, keep these slabs f32 instead.
    return dict(enc_w=bf16(enc_w), wfold2=bf16(wfold2),
                wa_stage=bf16(wa_stage), wv_stage=bf16(wv_stage),
                wp_stage=bf16(wp_stage), w_ro=bf16(w_ro),
                consts=consts)


def init_params(key):
    ks = iter(jax.random.split(key, 64))

    def rnd(shape, scale):
        return scale * jax.random.normal(next(ks), shape, dtype=jnp.float32)

    A, Vd, R, L, H = ADIM, VDIM, RANK, POLY_LEN, HEADS
    # "logical" parameters mirroring the PyTorch module structure (where implemented)
    p = dict(
        # simplified node encoder (placeholder, see TODO in discriminator_forward)
        enc_Wa1=rnd((1, A), 1.0), enc_ba1=rnd((A,), 0.1),
        enc_Wa2=rnd((A, A), A ** -0.5), enc_ba2=rnd((A,), 0.1),
        enc_Wv=rnd((1, Vd), 1.0),
        # Discriminator.lin_a (no bias) / lin_v (VecLinear, no bias)
        lin_a_W=rnd((L * A, A), (L * A) ** -0.5),
        lin_v_W=rnd((L * Vd, Vd), (L * Vd) ** -0.5),
        # DiscHead FlatResidual params, (heads, 3 stages, ...)
        W0=rnd((H, 3, A, A), A ** -0.5), b0=rnd((H, 3, A), 0.1),
        W1=rnd((H, 3, A, A), A ** -0.5), b1=rnd((H, 3, A), 0.1),
        W2=rnd((H, 3, A, A), A ** -0.5), b2=rnd((H, 3, A), 0.1),
        V0=rnd((H, 3, Vd, Vd), Vd ** -0.5),
        V1=rnd((H, 3, Vd, Vd), Vd ** -0.5),
        V2=rnd((H, 3, Vd, Vd), Vd ** -0.5),
        WaL=rnd((H, 3, A, R), A ** -0.5), WaR=rnd((H, 3, A, R), A ** -0.5),
        WvL=rnd((H, 3, Vd, R), Vd ** -0.5), WvR=rnd((H, 3, Vd, R), Vd ** -0.5),
        WoA=rnd((H, 3, R, A), R ** -0.5), WoV=rnd((H, 3, R, Vd), R ** -0.5),
        # DiscHead readouts
        wA=rnd((H, A), A ** -0.5), bA=rnd((H,), 0.1),
        wV=rnd((H, Vd), Vd ** -0.5), bV=rnd((H,), 0.1),
    )
    return pack_params(p)


if __name__ == "__main__":
    key = jax.random.PRNGKey(0)
    k0, k1, kp = jax.random.split(key, 3)
    pos_0 = jax.random.normal(k0, (BATCH, POLY_LEN, 3), dtype=jnp.float32)
    pos_1 = jax.random.normal(k1, (BATCH, POLY_LEN, 3), dtype=jnp.float32)
    packed = init_params(kp)

    out = jax.jit(discriminator_forward)(pos_0, pos_1, packed)
    out = jax.block_until_ready(out)
    assert out.shape == (BATCH, HEADS) and out.dtype == jnp.float32
    assert bool(jnp.all(jnp.isfinite(out)))
    print("KERNEL_OK")
</pallas_src>

<mosaic_0001>
module attributes {stable_mosaic.version = 11 : i64} {
  func.func @disc_kernel(%arg0: memref<6x8xf32, #tpu.memory_space<vmem>>, %arg1: memref<8x288xbf16, #tpu.memory_space<vmem>>, %arg2: memref<256x64xbf16, #tpu.memory_space<vmem>>, %arg3: memref<3x64x384xbf16, #tpu.memory_space<vmem>>, %arg4: memref<3x32x384xbf16, #tpu.memory_space<vmem>>, %arg5: memref<3x16x256xbf16, #tpu.memory_space<vmem>>, %arg6: memref<96x2xbf16, #tpu.memory_space<vmem>>, %arg7: memref<12x256xf32, #tpu.memory_space<vmem>>, %arg8: memref<2x2xf32, #tpu.memory_space<vmem>>) attributes {dimension_semantics = [], scalar_prefetch = 0 : i64, scratch_operands = 0 : i64, tpu.core_type = #tpu.core_type<tc>} {
    %c0 = arith.constant 0 : index
    %c0_0 = arith.constant 0 : index
    %0 = vector.load %arg0[%c0, %c0_0] : memref<6x8xf32, #tpu.memory_space<vmem>>, vector<6x8xf32>
    %1 = vector.extract_strided_slice %0 {offsets = [0, 0], sizes = [2, 8], strides = [1, 1]} : vector<6x8xf32> to vector<2x8xf32>
    %2 = vector.extract_strided_slice %0 {offsets = [2, 0], sizes = [2, 8], strides = [1, 1]} : vector<6x8xf32> to vector<2x8xf32>
    %3 = vector.extract_strided_slice %0 {offsets = [4, 0], sizes = [2, 8], strides = [1, 1]} : vector<6x8xf32> to vector<2x8xf32>
    %4 = arith.mulf %1, %1 : vector<2x8xf32>
    %5 = arith.mulf %2, %2 : vector<2x8xf32>
    %6 = arith.addf %4, %5 : vector<2x8xf32>
    %7 = arith.mulf %3, %3 : vector<2x8xf32>
    %8 = arith.addf %6, %7 : vector<2x8xf32>
    %9 = math.sqrt %8 : vector<2x8xf32>
    %10 = tpu.concatenate %9, %9, %9 in 0 : vector<2x8xf32>, vector<2x8xf32>, vector<2x8xf32> -> vector<6x8xf32>
    %c0_1 = arith.constant 0 : index
    %c0_2 = arith.constant 0 : index
    %11 = vector.load %arg1[%c0_1, %c0_2] : memref<8x288xbf16, #tpu.memory_space<vmem>>, vector<8x256xbf16>
    %12 = arith.truncf %9 : vector<2x8xf32> to vector<2x8xbf16>
    %cst = arith.constant dense<0.000000e+00> : vector<2x256xf32>
    %13 = tpu.matmul %12, %11, %cst {dimension_numbers = #tpu.dot_dimension_numbers<[1], [0], [0], [1], [0, 0, 1, 1], [], []>} : vector<2x8xbf16>, vector<8x256xbf16>, vector<2x256xf32> -> vector<2x256xf32>
    %c0_3 = arith.constant 0 : index
    %c0_4 = arith.constant 0 : index
    %14 = vector.load %arg7[%c0_3, %c0_4] : memref<12x256xf32, #tpu.memory_space<vmem>>, vector<1x256xf32>
    %15 = vector.broadcast %14 : vector<1x256xf32> to vector<2x256xf32>
    %16 = arith.addf %13, %15 : vector<2x256xf32>
    %cst_5 = arith.constant 0.000000e+00 : f32
    %17 = vector.broadcast %cst_5 : f32 to vector<2x256xf32>
    %18 = arith.cmpf ogt, %16, %17 : vector<2x256xf32>
    %cst_6 = arith.constant 2.000000e-01 : f32
    %19 = vector.broadcast %cst_6 : f32 to vector<2x256xf32>
    %20 = arith.mulf %19, %16 : vector<2x256xf32>
    %21 = arith.select %18, %16, %20 : vector<2x256xi1>, vector<2x256xf32>
    %c0_7 = arith.constant 0 : index
    %c0_8 = arith.constant 0 : index
    %22 = vector.load %arg2[%c0_7, %c0_8] : memref<256x64xbf16, #tpu.memory_space<vmem>>, vector<256x64xbf16>
    %23 = arith.truncf %21 : vector<2x256xf32> to vector<2x256xbf16>
    %cst_9 = arith.constant dense<0.000000e+00> : vector<2x64xf32>
    %24 = tpu.matmul %23, %22, %cst_9 {dimension_numbers = #tpu.dot_dimension_numbers<[1], [0], [0], [1], [0, 0, 1, 1], [], []>} : vector<2x256xbf16>, vector<256x64xbf16>, vector<2x64xf32> -> vector<2x64xf32>
    %c1 = arith.constant 1 : index
    %c0_10 = arith.constant 0 : index
    %25 = vector.load %arg7[%c1, %c0_10] : memref<12x256xf32, #tpu.memory_space<vmem>>, vector<1x64xf32>
    %26 = vector.broadcast %25 : vector<1x64xf32> to vector<2x64xf32>
    %27 = arith.addf %24, %26 : vector<2x64xf32>
    %28 = arith.mulf %0, %10 : vector<6x8xf32>
    %c0_11 = arith.constant 0 : index
    %c256 = arith.constant 256 : index
    %29 = vector.load %arg1[%c0_11, %c256] : memref<8x288xbf16, #tpu.memory_space<vmem>>, vector<8x32xbf16>
    %30 = arith.truncf %28 : vector<6x8xf32> to vector<6x8xbf16>
    %cst_12 = arith.constant dense<0.000000e+00> : vector<6x32xf32>
    %31 = tpu.matmul %30, %29, %cst_12 {dimension_numbers = #tpu.dot_dimension_numbers<[1], [0], [0], [1], [0, 0, 1, 1], [], []>} : vector<6x8xbf16>, vector<8x32xbf16>, vector<6x32xf32> -> vector<6x32xf32>
    %c2 = arith.constant 2 : index
    %c0_13 = arith.constant 0 : index
    %32 = vector.load %arg7[%c2, %c0_13] : memref<12x256xf32, #tpu.memory_space<vmem>>, vector<1x64xf32>
    %c3 = arith.constant 3 : index
    %c0_14 = arith.constant 0 : index
    %33 = vector.load %arg7[%c3, %c0_14] : memref<12x256xf32, #tpu.memory_space<vmem>>, vector<1x64xf32>
    %c4 = arith.constant 4 : index
    %c0_15 = arith.constant 0 : index
    %34 = vector.load %arg7[%c4, %c0_15] : memref<12x256xf32, #tpu.memory_space<vmem>>, vector<1x64xf32>
    %c0_16 = arith.constant 0 : index
    %c0_17 = arith.constant 0 : index
    %c0_18 = arith.constant 0 : index
    %35 = vector.load %arg3[%c0_16, %c0_17, %c0_18] : memref<3x64x384xbf16, #tpu.memory_space<vmem>>, vector<1x64x96xbf16>
    %36 = vector.shape_cast %35 : vector<1x64x96xbf16> to vector<64x96xbf16>
    %37 = arith.truncf %27 : vector<2x64xf32> to vector<2x64xbf16>
    %cst_19 = arith.constant dense<0.000000e+00> : vector<2x96xf32>
    %38 = tpu.matmul %37, %36, %cst_19 {dimension_numbers = #tpu.dot_dimension_numbers<[1], [0], [0], [1], [0, 0, 1, 1], [], []>} : vector<2x64xbf16>, vector<64x96xbf16>, vector<2x96xf32> -> vector<2x96xf32>
    %39 = vector.extract_strided_slice %38 {offsets = [0, 0], sizes = [2, 64], strides = [1, 1]} : vector<2x96xf32> to vector<2x64xf32>
    %40 = vector.broadcast %32 : vector<1x64xf32> to vector<2x64xf32>
    %41 = arith.addf %39, %40 : vector<2x64xf32>
    %cst_20 = arith.constant 0.000000e+00 : f32
    %42 = vector.broadcast %cst_20 : f32 to vector<2x64xf32>
    %43 = arith.cmpf ogt, %41, %42 : vector<2x64xf32>
    %cst_21 = arith.constant 2.000000e-01 : f32
    %44 = vector.broadcast %cst_21 : f32 to vector<2x64xf32>
    %45 = arith.mulf %44, %41 : vector<2x64xf32>
    %46 = arith.select %43, %41, %45 : vector<2x64xi1>, vector<2x64xf32>
    %47 = vector.extract_strided_slice %38 {offsets = [0, 64], sizes = [2, 16], strides = [1, 1]} : vector<2x96xf32> to vector<2x16xf32>
    %48 = vector.extract_strided_slice %38 {offsets = [0, 80], sizes = [2, 16], strides = [1, 1]} : vector<2x96xf32> to vector<2x16xf32>
    %c0_22 = arith.constant 0 : index
    %c0_23 = arith.constant 0 : index
    %c128 = arith.constant 128 : index
    %49 = vector.load %arg3[%c0_22, %c0_23, %c128] : memref<3x64x384xbf16, #tpu.memory_space<vmem>>, vector<1x64x64xbf16>
    %50 = vector.shape_cast %49 : vector<1x64x64xbf16> to vector<64x64xbf16>
    %51 = arith.truncf %46 : vector<2x64xf32> to vector<2x64xbf16>
    %cst_24 = arith.constant dense<0.000000e+00> : vector<2x64xf32>
    %52 = tpu.matmul %51, %50, %cst_24 {dimension_numbers = #tpu.dot_dimension_numbers<[1], [0], [0], [1], [0, 0, 1, 1], [], []>} : vector<2x64xbf16>, vector<64x64xbf16>, vector<2x64xf32> -> vector<2x64xf32>
    %53 = vector.broadcast %33 : vector<1x64xf32> to vector<2x64xf32>
    %54 = arith.addf %52, %53 : vector<2x64xf32>
    %cst_25 = arith.constant 0.000000e+00 : f32
    %55 = vector.broadcast %cst_25 : f32 to vector<2x64xf32>
    %56 = arith.cmpf ogt, %54, %55 : vector<2x64xf32>
    %cst_26 = arith.constant 2.000000e-01 : f32
    %57 = vector.broadcast %cst_26 : f32 to vector<2x64xf32>
    %58 = arith.mulf %57, %54 : vector<2x64xf32>
    %59 = arith.select %56, %54, %58 : vector<2x64xi1>, vector<2x64xf32>
    %c0_27 = arith.constant 0 : index
    %c0_28 = arith.constant 0 : index
    %c256_29 = arith.constant 256 : index
    %60 = vector.load %arg3[%c0_27, %c0_28, %c256_29] : memref<3x64x384xbf16, #tpu.memory_space<vmem>>, vector<1x64x64xbf16>
    %61 = vector.shape_cast %60 : vector<1x64x64xbf16> to vector<64x64xbf16>
    %62 = arith.truncf %59 : vector<2x64xf32> to vector<2x64xbf16>
    %cst_30 = arith.constant dense<0.000000e+00> : vector<2x64xf32>
    %63 = tpu.matmul %62, %61, %cst_30 {dimension_numbers = #tpu.dot_dimension_numbers<[1], [0], [0], [1], [0, 0, 1, 1], [], []>} : vector<2x64xbf16>, vector<64x64xbf16>, vector<2x64xf32> -> vector<2x64xf32>
    %64 = vector.broadcast %34 : vector<1x64xf32> to vector<2x64xf32>
    %65 = arith.addf %63, %64 : vector<2x64xf32>
    %c0_31 = arith.constant 0 : index
    %c0_32 = arith.constant 0 : index
    %c0_33 = arith.constant 0 : index
    %66 = vector.load %arg4[%c0_31, %c0_32, %c0_33] : memref<3x32x384xbf16, #tpu.memory_space<vmem>>, vector<1x32x64xbf16>
    %67 = vector.shape_cast %66 : vector<1x32x64xbf16> to vector<32x64xbf16>
    %68 = arith.truncf %31 : vector<6x32xf32> to vector<6x32xbf16>
    %cst_34 = arith.constant dense<0.000000e+00> : vector<6x64xf32>
    %69 = tpu.matmul %68, %67, %cst_34 {dimension_numbers = #tpu.dot_dimension_numbers<[1], [0], [0], [1], [0, 0, 1, 1], [], []>} : vector<6x32xbf16>, vector<32x64xbf16>, vector<6x64xf32> -> vector<6x64xf32>
    %70 = vector.extract_strided_slice %69 {offsets = [0, 0], sizes = [6, 32], strides = [1, 1]} : vector<6x64xf32> to vector<6x32xf32>
    %71 = vector.extract_strided_slice %70 {offsets = [0, 0], sizes = [2, 32], strides = [1, 1]} : vector<6x32xf32> to vector<2x32xf32>
    %72 = vector.extract_strided_slice %70 {offsets = [2, 0], sizes = [2, 32], strides = [1, 1]} : vector<6x32xf32> to vector<2x32xf32>
    %73 = vector.extract_strided_slice %70 {offsets = [4, 0], sizes = [2, 32], strides = [1, 1]} : vector<6x32xf32> to vector<2x32xf32>
    %74 = arith.mulf %71, %71 : vector<2x32xf32>
    %75 = arith.mulf %72, %72 : vector<2x32xf32>
    %76 = arith.addf %74, %75 : vector<2x32xf32>
    %77 = arith.mulf %73, %73 : vector<2x32xf32>
    %78 = arith.addf %76, %77 : vector<2x32xf32>
    %79 = math.sqrt %78 : vector<2x32xf32>
    %cst_35 = arith.constant 1.000000e+00 : f32
    %80 = vector.broadcast %cst_35 : f32 to vector<2x32xf32>
    %81 = arith.addf %80, %79 : vector<2x32xf32>
    %82 = math.rsqrt %81 : vector<2x32xf32>
    %83 = tpu.concatenate %82, %82, %82 in 0 : vector<2x32xf32>, vector<2x32xf32>, vector<2x32xf32> -> vector<6x32xf32>
    %84 = arith.mulf %70, %83 : vector<6x32xf32>
    %85 = vector.extract_strided_slice %69 {offsets = [0, 32], sizes = [6, 16], strides = [1, 1]} : vector<6x64xf32> to vector<6x16xf32>
    %86 = vector.extract_strided_slice %69 {offsets = [0, 48], sizes = [6, 16], strides = [1, 1]} : vector<6x64xf32> to vector<6x16xf32>
    %c0_36 = arith.constant 0 : index
    %c0_37 = arith.constant 0 : index
    %c128_38 = arith.constant 128 : index
    %87 = vector.load %arg4[%c0_36, %c0_37, %c128_38] : memref<3x32x384xbf16, #tpu.memory_space<vmem>>, vector<1x32x32xbf16>
    %88 = vector.shape_cast %87 : vector<1x32x32xbf16> to vector<32x32xbf16>
    %89 = arith.truncf %84 : vector<6x32xf32> to vector<6x32xbf16>
    %cst_39 = arith.constant dense<0.000000e+00> : vector<6x32xf32>
    %90 = tpu.matmul %89, %88, %cst_39 {dimension_numbers = #tpu.dot_dimension_numbers<[1], [0], [0], [1], [0, 0, 1, 1], [], []>} : vector<6x32xbf16>, vector<32x32xbf16>, vector<6x32xf32> -> vector<6x32xf32>
    %91 = vector.extract_strided_slice %90 {offsets = [0, 0], sizes = [2, 32], strides = [1, 1]} : vector<6x32xf32> to vector<2x32xf32>
    %92 = vector.extract_strided_slice %90 {offsets = [2, 0], sizes = [2, 32], strides = [1, 1]} : vector<6x32xf32> to vector<2x32xf32>
    %93 = vector.extract_strided_slice %90 {offsets = [4, 0], sizes = [2, 32], strides = [1, 1]} : vector<6x32xf32> to vector<2x32xf32>
    %94 = arith.mulf %91, %91 : vector<2x32xf32>
    %95 = arith.mulf %92, %92 : vector<2x32xf32>
    %96 = arith.addf %94, %95 : vector<2x32xf32>
    %97 = arith.mulf %93, %93 : vector<2x32xf32>
    %98 = arith.addf %96, %97 : vector<2x32xf32>
    %99 = math.sqrt %98 : vector<2x32xf32>
    %cst_40 = arith.constant 1.000000e+00 : f32
    %100 = vector.broadcast %cst_40 : f32 to vector<2x32xf32>
    %101 = arith.addf %100, %99 : vector<2x32xf32>
    %102 = math.rsqrt %101 : vector<2x32xf32>
    %103 = tpu.concatenate %102, %102, %102 in 0 : vector<2x32xf32>, vector<2x32xf32>, vector<2x32xf32> -> vector<6x32xf32>
    %104 = arith.mulf %90, %103 : vector<6x32xf32>
    %c0_41 = arith.constant 0 : index
    %c0_42 = arith.constant 0 : index
    %c256_43 = arith.constant 256 : index
    %105 = vector.load %arg4[%c0_41, %c0_42, %c256_43] : memref<3x32x384xbf16, #tpu.memory_space<vmem>>, vector<1x32x32xbf16>
    %106 = vector.shape_cast %105 : vector<1x32x32xbf16> to vector<32x32xbf16>
    %107 = arith.truncf %104 : vector<6x32xf32> to vector<6x32xbf16>
    %cst_44 = arith.constant dense<0.000000e+00> : vector<6x32xf32>
    %108 = tpu.matmul %107, %106, %cst_44 {dimension_numbers = #tpu.dot_dimension_numbers<[1], [0], [0], [1], [0, 0, 1, 1], [], []>} : vector<6x32xbf16>, vector<32x32xbf16>, vector<6x32xf32> -> vector<6x32xf32>
    %109 = vector.extract_strided_slice %85 {offsets = [0, 0], sizes = [2, 16], strides = [1, 1]} : vector<6x16xf32> to vector<2x16xf32>
    %110 = vector.extract_strided_slice %86 {offsets = [0, 0], sizes = [2, 16], strides = [1, 1]} : vector<6x16xf32> to vector<2x16xf32>
    %111 = arith.mulf %109, %110 : vector<2x16xf32>
    %112 = vector.extract_strided_slice %85 {offsets = [2, 0], sizes = [2, 16], strides = [1, 1]} : vector<6x16xf32> to vector<2x16xf32>
    %113 = vector.extract_strided_slice %86 {offsets = [2, 0], sizes = [2, 16], strides = [1, 1]} : vector<6x16xf32> to vector<2x16xf32>
    %114 = arith.mulf %112, %113 : vector<2x16xf32>
    %115 = arith.addf %111, %114 : vector<2x16xf32>
    %116 = vector.extract_strided_slice %85 {offsets = [4, 0], sizes = [2, 16], strides = [1, 1]} : vector<6x16xf32> to vector<2x16xf32>
    %117 = vector.extract_strided_slice %86 {offsets = [4, 0], sizes = [2, 16], strides = [1, 1]} : vector<6x16xf32> to vector<2x16xf32>
    %118 = arith.mulf %116, %117 : vector<2x16xf32>
    %119 = arith.addf %115, %118 : vector<2x16xf32>
    %120 = arith.mulf %47, %48 : vector<2x16xf32>
    %121 = arith.addf %120, %119 : vector<2x16xf32>
    %c0_45 = arith.constant 0 : index
    %c0_46 = arith.constant 0 : index
    %c0_47 = arith.constant 0 : index
    %122 = vector.load %arg5[%c0_45, %c0_46, %c0_47] : memref<3x16x256xbf16, #tpu.memory_space<vmem>>, vector<1x16x64xbf16>
    %123 = vector.shape_cast %122 : vector<1x16x64xbf16> to vector<16x64xbf16>
    %124 = arith.truncf %121 : vector<2x16xf32> to vector<2x16xbf16>
    %cst_48 = arith.constant dense<0.000000e+00> : vector<2x64xf32>
    %125 = tpu.matmul %124, %123, %cst_48 {dimension_numbers = #tpu.dot_dimension_numbers<[1], [0], [0], [1], [0, 0, 1, 1], [], []>} : vector<2x16xbf16>, vector<16x64xbf16>, vector<2x64xf32> -> vector<2x64xf32>
    %126 = tpu.concatenate %47, %47, %47 in 0 : vector<2x16xf32>, vector<2x16xf32>, vector<2x16xf32> -> vector<6x16xf32>
    %127 = arith.mulf %126, %86 : vector<6x16xf32>
    %c0_49 = arith.constant 0 : index
    %c0_50 = arith.constant 0 : index
    %c128_51 = arith.constant 128 : index
    %128 = vector.load %arg5[%c0_49, %c0_50, %c128_51] : memref<3x16x256xbf16, #tpu.memory_space<vmem>>, vector<1x16x32xbf16>
    %129 = vector.shape_cast %128 : vector<1x16x32xbf16> to vector<16x32xbf16>
    %130 = arith.truncf %127 : vector<6x16xf32> to vector<6x16xbf16>
    %cst_52 = arith.constant dense<0.000000e+00> : vector<6x32xf32>
    %131 = tpu.matmul %130, %129, %cst_52 {dimension_numbers = #tpu.dot_dimension_numbers<[1], [0], [0], [1], [0, 0, 1, 1], [], []>} : vector<6x16xbf16>, vector<16x32xbf16>, vector<6x32xf32> -> vector<6x32xf32>
    %132 = arith.addf %65, %125 : vector<2x64xf32>
    %cst_53 = arith.constant 5.000000e-01 : f32
    %133 = vector.broadcast %cst_53 : f32 to vector<2x64xf32>
    %134 = arith.mulf %132, %133 : vector<2x64xf32>
    %135 = arith.addf %27, %134 : vector<2x64xf32>
    %136 = arith.addf %108, %131 : vector<6x32xf32>
    %cst_54 = arith.constant 5.000000e-02 : f32
    %137 = vector.broadcast %cst_54 : f32 to vector<6x32xf32>
    %138 = arith.mulf %136, %137 : vector<6x32xf32>
    %139 = arith.addf %31, %138 : vector<6x32xf32>
    %c5 = arith.constant 5 : index
    %c0_55 = arith.constant 0 : index
    %140 = vector.load %arg7[%c5, %c0_55] : memref<12x256xf32, #tpu.memory_space<vmem>>, vector<1x64xf32>
    %c6 = arith.constant 6 : index
    %c0_56 = arith.constant 0 : index
    %141 = vector.load %arg7[%c6, %c0_56] : memref<12x256xf32, #tpu.memory_space<vmem>>, vector<1x64xf32>
    %c7 = arith.constant 7 : index
    %c0_57 = arith.constant 0 : index
    %142 = vector.load %arg7[%c7, %c0_57] : memref<12x256xf32, #tpu.memory_space<vmem>>, vector<1x64xf32>
    %c1_58 = arith.constant 1 : index
    %c0_59 = arith.constant 0 : index
    %c0_60 = arith.constant 0 : index
    %143 = vector.load %arg3[%c1_58, %c0_59, %c0_60] : memref<3x64x384xbf16, #tpu.memory_space<vmem>>, vector<1x64x96xbf16>
    %144 = vector.shape_cast %143 : vector<1x64x96xbf16> to vector<64x96xbf16>
    %145 = arith.truncf %135 : vector<2x64xf32> to vector<2x64xbf16>
    %cst_61 = arith.constant dense<0.000000e+00> : vector<2x96xf32>
    %146 = tpu.matmul %145, %144, %cst_61 {dimension_numbers = #tpu.dot_dimension_numbers<[1], [0], [0], [1], [0, 0, 1, 1], [], []>} : vector<2x64xbf16>, vector<64x96xbf16>, vector<2x96xf32> -> vector<2x96xf32>
    %147 = vector.extract_strided_slice %146 {offsets = [0, 0], sizes = [2, 64], strides = [1, 1]} : vector<2x96xf32> to vector<2x64xf32>
    %148 = vector.broadcast %140 : vector<1x64xf32> to vector<2x64xf32>
    %149 = arith.addf %147, %148 : vector<2x64xf32>
    %cst_62 = arith.constant 0.000000e+00 : f32
    %150 = vector.broadcast %cst_62 : f32 to vector<2x64xf32>
    %151 = arith.cmpf ogt, %149, %150 : vector<2x64xf32>
    %cst_63 = arith.constant 2.000000e-01 : f32
    %152 = vector.broadcast %cst_63 : f32 to vector<2x64xf32>
    %153 = arith.mulf %152, %149 : vector<2x64xf32>
    %154 = arith.select %151, %149, %153 : vector<2x64xi1>, vector<2x64xf32>
    %155 = vector.extract_strided_slice %146 {offsets = [0, 64], sizes = [2, 16], strides = [1, 1]} : vector<2x96xf32> to vector<2x16xf32>
    %156 = vector.extract_strided_slice %146 {offsets = [0, 80], sizes = [2, 16], strides = [1, 1]} : vector<2x96xf32> to vector<2x16xf32>
    %c1_64 = arith.constant 1 : index
    %c0_65 = arith.constant 0 : index
    %c128_66 = arith.constant 128 : index
    %157 = vector.load %arg3[%c1_64, %c0_65, %c128_66] : memref<3x64x384xbf16, #tpu.memory_space<vmem>>, vector<1x64x64xbf16>
    %158 = vector.shape_cast %157 : vector<1x64x64xbf16> to vector<64x64xbf16>
    %159 = arith.truncf %154 : vector<2x64xf32> to vector<2x64xbf16>
    %cst_67 = arith.constant dense<0.000000e+00> : vector<2x64xf32>
    %160 = tpu.matmul %159, %158, %cst_67 {dimension_numbers = #tpu.dot_dimension_numbers<[1], [0], [0], [1], [0, 0, 1, 1], [], []>} : vector<2x64xbf16>, vector<64x64xbf16>, vector<2x64xf32> -> vector<2x64xf32>
    %161 = vector.broadcast %141 : vector<1x64xf32> to vector<2x64xf32>
    %162 = arith.addf %160, %161 : vector<2x64xf32>
    %cst_68 = arith.constant 0.000000e+00 : f32
    %163 = vector.broadcast %cst_68 : f32 to vector<2x64xf32>
    %164 = arith.cmpf ogt, %162, %163 : vector<2x64xf32>
    %cst_69 = arith.constant 2.000000e-01 : f32
    %165 = vector.broadcast %cst_69 : f32 to vector<2x64xf32>
    %166 = arith.mulf %165, %162 : vector<2x64xf32>
    %167 = arith.select %164, %162, %166 : vector<2x64xi1>, vector<2x64xf32>
    %c1_70 = arith.constant 1 : index
    %c0_71 = arith.constant 0 : index
    %c256_72 = arith.constant 256 : index
    %168 = vector.load %arg3[%c1_70, %c0_71, %c256_72] : memref<3x64x384xbf16, #tpu.memory_space<vmem>>, vector<1x64x64xbf16>
    %169 = vector.shape_cast %168 : vector<1x64x64xbf16> to vector<64x64xbf16>
    %170 = arith.truncf %167 : vector<2x64xf32> to vector<2x64xbf16>
    %cst_73 = arith.constant dense<0.000000e+00> : vector<2x64xf32>
    %171 = tpu.matmul %170, %169, %cst_73 {dimension_numbers = #tpu.dot_dimension_numbers<[1], [0], [0], [1], [0, 0, 1, 1], [], []>} : vector<2x64xbf16>, vector<64x64xbf16>, vector<2x64xf32> -> vector<2x64xf32>
    %172 = vector.broadcast %142 : vector<1x64xf32> to vector<2x64xf32>
    %173 = arith.addf %171, %172 : vector<2x64xf32>
    %c1_74 = arith.constant 1 : index
    %c0_75 = arith.constant 0 : index
    %c0_76 = arith.constant 0 : index
    %174 = vector.load %arg4[%c1_74, %c0_75, %c0_76] : memref<3x32x384xbf16, #tpu.memory_space<vmem>>, vector<1x32x64xbf16>
    %175 = vector.shape_cast %174 : vector<1x32x64xbf16> to vector<32x64xbf16>
    %176 = arith.truncf %139 : vector<6x32xf32> to vector<6x32xbf16>
    %cst_77 = arith.constant dense<0.000000e+00> : vector<6x64xf32>
    %177 = tpu.matmul %176, %175, %cst_77 {dimension_numbers = #tpu.dot_dimension_numbers<[1], [0], [0], [1], [0, 0, 1, 1], [], []>} : vector<6x32xbf16>, vector<32x64xbf16>, vector<6x64xf32> -> vector<6x64xf32>
    %178 = vector.extract_strided_slice %177 {offsets = [0, 0], sizes = [6, 32], strides = [1, 1]} : vector<6x64xf32> to vector<6x32xf32>
    %179 = vector.extract_strided_slice %178 {offsets = [0, 0], sizes = [2, 32], strides = [1, 1]} : vector<6x32xf32> to vector<2x32xf32>
    %180 = vector.extract_strided_slice %178 {offsets = [2, 0], sizes = [2, 32], strides = [1, 1]} : vector<6x32xf32> to vector<2x32xf32>
    %181 = vector.extract_strided_slice %178 {offsets = [4, 0], sizes = [2, 32], strides = [1, 1]} : vector<6x32xf32> to vector<2x32xf32>
    %182 = arith.mulf %179, %179 : vector<2x32xf32>
    %183 = arith.mulf %180, %180 : vector<2x32xf32>
    %184 = arith.addf %182, %183 : vector<2x32xf32>
    %185 = arith.mulf %181, %181 : vector<2x32xf32>
    %186 = arith.addf %184, %185 : vector<2x32xf32>
    %187 = math.sqrt %186 : vector<2x32xf32>
    %cst_78 = arith.constant 1.000000e+00 : f32
    %188 = vector.broadcast %cst_78 : f32 to vector<2x32xf32>
    %189 = arith.addf %188, %187 : vector<2x32xf32>
    %190 = math.rsqrt %189 : vector<2x32xf32>
    %191 = tpu.concatenate %190, %190, %190 in 0 : vector<2x32xf32>, vector<2x32xf32>, vector<2x32xf32> -> vector<6x32xf32>
    %192 = arith.mulf %178, %191 : vector<6x32xf32>
    %193 = vector.extract_strided_slice %177 {offsets = [0, 32], sizes = [6, 16], strides = [1, 1]} : vector<6x64xf32> to vector<6x16xf32>
    %194 = vector.extract_strided_slice %177 {offsets = [0, 48], sizes = [6, 16], strides = [1, 1]} : vector<6x64xf32> to vector<6x16xf32>
    %c1_79 = arith.constant 1 : index
    %c0_80 = arith.constant 0 : index
    %c128_81 = arith.constant 128 : index
    %195 = vector.load %arg4[%c1_79, %c0_80, %c128_81] : memref<3x32x384xbf16, #tpu.memory_space<vmem>>, vector<1x32x32xbf16>
    %196 = vector.shape_cast %195 : vector<1x32x32xbf16> to vector<32x32xbf16>
    %197 = arith.truncf %192 : vector<6x32xf32> to vector<6x32xbf16>
    %cst_82 = arith.constant dense<0.000000e+00> : vector<6x32xf32>
    %198 = tpu.matmul %197, %196, %cst_82 {dimension_numbers = #tpu.dot_dimension_numbers<[1], [0], [0], [1], [0, 0, 1, 1], [], []>} : vector<6x32xbf16>, vector<32x32xbf16>, vector<6x32xf32> -> vector<6x32xf32>
    %199 = vector.extract_strided_slice %198 {offsets = [0, 0], sizes = [2, 32], strides = [1, 1]} : vector<6x32xf32> to vector<2x32xf32>
    %200 = vector.extract_strided_slice %198 {offsets = [2, 0], sizes = [2, 32], strides = [1, 1]} : vector<6x32xf32> to vector<2x32xf32>
    %201 = vector.extract_strided_slice %198 {offsets = [4, 0], sizes = [2, 32], strides = [1, 1]} : vector<6x32xf32> to vector<2x32xf32>
    %202 = arith.mulf %199, %199 : vector<2x32xf32>
    %203 = arith.mulf %200, %200 : vector<2x32xf32>
    %204 = arith.addf %202, %203 : vector<2x32xf32>
    %205 = arith.mulf %201, %201 : vector<2x32xf32>
    %206 = arith.addf %204, %205 : vector<2x32xf32>
    %207 = math.sqrt %206 : vector<2x32xf32>
    %cst_83 = arith.constant 1.000000e+00 : f32
    %208 = vector.broadcast %cst_83 : f32 to vector<2x32xf32>
    %209 = arith.addf %208, %207 : vector<2x32xf32>
    %210 = math.rsqrt %209 : vector<2x32xf32>
    %211 = tpu.concatenate %210, %210, %210 in 0 : vector<2x32xf32>, vector<2x32xf32>, vector<2x32xf32> -> vector<6x32xf32>
    %212 = arith.mulf %198, %211 : vector<6x32xf32>
    %c1_84 = arith.constant 1 : index
    %c0_85 = arith.constant 0 : index
    %c256_86 = arith.constant 256 : index
    %213 = vector.load %arg4[%c1_84, %c0_85, %c256_86] : memref<3x32x384xbf16, #tpu.memory_space<vmem>>, vector<1x32x32xbf16>
    %214 = vector.shape_cast %213 : vector<1x32x32xbf16> to vector<32x32xbf16>
    %215 = arith.truncf %212 : vector<6x32xf32> to vector<6x32xbf16>
    %cst_87 = arith.constant dense<0.000000e+00> : vector<6x32xf32>
    %216 = tpu.matmul %215, %214, %cst_87 {dimension_numbers = #tpu.dot_dimension_numbers<[1], [0], [0], [1], [0, 0, 1, 1], [], []>} : vector<6x32xbf16>, vector<32x32xbf16>, vector<6x32xf32> -> vector<6x32xf32>
    %217 = vector.extract_strided_slice %193 {offsets = [0, 0], sizes = [2, 16], strides = [1, 1]} : vector<6x16xf32> to vector<2x16xf32>
    %218 = vector.extract_strided_slice %194 {offsets = [0, 0], sizes = [2, 16], strides = [1, 1]} : vector<6x16xf32> to vector<2x16xf32>
    %219 = arith.mulf %217, %218 : vector<2x16xf32>
    %220 = vector.extract_strided_slice %193 {offsets = [2, 0], sizes = [2, 16], strides = [1, 1]} : vector<6x16xf32> to vector<2x16xf32>
    %221 = vector.extract_strided_slice %194 {offsets = [2, 0], sizes = [2, 16], strides = [1, 1]} : vector<6x16xf32> to vector<2x16xf32>
    %222 = arith.mulf %220, %221 : vector<2x16xf32>
    %223 = arith.addf %219, %222 : vector<2x16xf32>
    %224 = vector.extract_strided_slice %193 {offsets = [4, 0], sizes = [2, 16], strides = [1, 1]} : vector<6x16xf32> to vector<2x16xf32>
    %225 = vector.extract_strided_slice %194 {offsets = [4, 0], sizes = [2, 16], strides = [1, 1]} : vector<6x16xf32> to vector<2x16xf32>
    %226 = arith.mulf %224, %225 : vector<2x16xf32>
    %227 = arith.addf %223, %226 : vector<2x16xf32>
    %228 = arith.mulf %155, %156 : vector<2x16xf32>
    %229 = arith.addf %228, %227 : vector<2x16xf32>
    %c1_88 = arith.constant 1 : index
    %c0_89 = arith.constant 0 : index
    %c0_90 = arith.constant 0 : index
    %230 = vector.load %arg5[%c1_88, %c0_89, %c0_90] : memref<3x16x256xbf16, #tpu.memory_space<vmem>>, vector<1x16x64xbf16>
    %231 = vector.shape_cast %230 : vector<1x16x64xbf16> to vector<16x64xbf16>
    %232 = arith.truncf %229 : vector<2x16xf32> to vector<2x16xbf16>
    %cst_91 = arith.constant dense<0.000000e+00> : vector<2x64xf32>
    %233 = tpu.matmul %232, %231, %cst_91 {dimension_numbers = #tpu.dot_dimension_numbers<[1], [0], [0], [1], [0, 0, 1, 1], [], []>} : vector<2x16xbf16>, vector<16x64xbf16>, vector<2x64xf32> -> vector<2x64xf32>
    %234 = tpu.concatenate %155, %155, %155 in 0 : vector<2x16xf32>, vector<2x16xf32>, vector<2x16xf32> -> vector<6x16xf32>
    %235 = arith.mulf %234, %194 : vector<6x16xf32>
    %c1_92 = arith.constant 1 : index
    %c0_93 = arith.constant 0 : index
    %c128_94 = arith.constant 128 : index
    %236 = vector.load %arg5[%c1_92, %c0_93, %c128_94] : memref<3x16x256xbf16, #tpu.memory_space<vmem>>, vector<1x16x32xbf16>
    %237 = vector.shape_cast %236 : vector<1x16x32xbf16> to vector<16x32xbf16>
    %238 = arith.truncf %235 : vector<6x16xf32> to vector<6x16xbf16>
    %cst_95 = arith.constant dense<0.000000e+00> : vector<6x32xf32>
    %239 = tpu.matmul %238, %237, %cst_95 {dimension_numbers = #tpu.dot_dimension_numbers<[1], [0], [0], [1], [0, 0, 1, 1], [], []>} : vector<6x16xbf16>, vector<16x32xbf16>, vector<6x32xf32> -> vector<6x32xf32>
    %240 = arith.addf %173, %233 : vector<2x64xf32>
    %cst_96 = arith.constant 5.000000e-01 : f32
    %241 = vector.broadcast %cst_96 : f32 to vector<2x64xf32>
    %242 = arith.mulf %240, %241 : vector<2x64xf32>
    %243 = arith.addf %135, %242 : vector<2x64xf32>
    %244 = arith.addf %216, %239 : vector<6x32xf32>
    %cst_97 = arith.constant 5.000000e-02 : f32
    %245 = vector.broadcast %cst_97 : f32 to vector<6x32xf32>
    %246 = arith.mulf %244, %245 : vector<6x32xf32>
    %247 = arith.addf %139, %246 : vector<6x32xf32>
    %c8 = arith.constant 8 : index
    %c0_98 = arith.constant 0 : index
    %248 = vector.load %arg7[%c8, %c0_98] : memref<12x256xf32, #tpu.memory_space<vmem>>, vector<1x64xf32>
    %c9 = arith.constant 9 : index
    %c0_99 = arith.constant 0 : index
    %249 = vector.load %arg7[%c9, %c0_99] : memref<12x256xf32, #tpu.memory_space<vmem>>, vector<1x64xf32>
    %c10 = arith.constant 10 : index
    %c0_100 = arith.constant 0 : index
    %250 = vector.load %arg7[%c10, %c0_100] : memref<12x256xf32, #tpu.memory_space<vmem>>, vector<1x64xf32>
    %c2_101 = arith.constant 2 : index
    %c0_102 = arith.constant 0 : index
    %c0_103 = arith.constant 0 : index
    %251 = vector.load %arg3[%c2_101, %c0_102, %c0_103] : memref<3x64x384xbf16, #tpu.memory_space<vmem>>, vector<1x64x96xbf16>
    %252 = vector.shape_cast %251 : vector<1x64x96xbf16> to vector<64x96xbf16>
    %253 = arith.truncf %243 : vector<2x64xf32> to vector<2x64xbf16>
    %cst_104 = arith.constant dense<0.000000e+00> : vector<2x96xf32>
    %254 = tpu.matmul %253, %252, %cst_104 {dimension_numbers = #tpu.dot_dimension_numbers<[1], [0], [0], [1], [0, 0, 1, 1], [], []>} : vector<2x64xbf16>, vector<64x96xbf16>, vector<2x96xf32> -> vector<2x96xf32>
    %255 = vector.extract_strided_slice %254 {offsets = [0, 0], sizes = [2, 64], strides = [1, 1]} : vector<2x96xf32> to vector<2x64xf32>
    %256 = vector.broadcast %248 : vector<1x64xf32> to vector<2x64xf32>
    %257 = arith.addf %255, %256 : vector<2x64xf32>
    %cst_105 = arith.constant 0.000000e+00 : f32
    %258 = vector.broadcast %cst_105 : f32 to vector<2x64xf32>
    %259 = arith.cmpf ogt, %257, %258 : vector<2x64xf32>
    %cst_106 = arith.constant 2.000000e-01 : f32
    %260 = vector.broadcast %cst_106 : f32 to vector<2x64xf32>
    %261 = arith.mulf %260, %257 : vector<2x64xf32>
    %262 = arith.select %259, %257, %261 : vector<2x64xi1>, vector<2x64xf32>
    %263 = vector.extract_strided_slice %254 {offsets = [0, 64], sizes = [2, 16], strides = [1, 1]} : vector<2x96xf32> to vector<2x16xf32>
    %264 = vector.extract_strided_slice %254 {offsets = [0, 80], sizes = [2, 16], strides = [1, 1]} : vector<2x96xf32> to vector<2x16xf32>
    %c2_107 = arith.constant 2 : index
    %c0_108 = arith.constant 0 : index
    %c128_109 = arith.constant 128 : index
    %265 = vector.load %arg3[%c2_107, %c0_108, %c128_109] : memref<3x64x384xbf16, #tpu.memory_space<vmem>>, vector<1x64x64xbf16>
    %266 = vector.shape_cast %265 : vector<1x64x64xbf16> to vector<64x64xbf16>
    %267 = arith.truncf %262 : vector<2x64xf32> to vector<2x64xbf16>
    %cst_110 = arith.constant dense<0.000000e+00> : vector<2x64xf32>
    %268 = tpu.matmul %267, %266, %cst_110 {dimension_numbers = #tpu.dot_dimension_numbers<[1], [0], [0], [1], [0, 0, 1, 1], [], []>} : vector<2x64xbf16>, vector<64x64xbf16>, vector<2x64xf32> -> vector<2x64xf32>
    %269 = vector.broadcast %249 : vector<1x64xf32> to vector<2x64xf32>
    %270 = arith.addf %268, %269 : vector<2x64xf32>
    %cst_111 = arith.constant 0.000000e+00 : f32
    %271 = vector.broadcast %cst_111 : f32 to vector<2x64xf32>
    %272 = arith.cmpf ogt, %270, %271 : vector<2x64xf32>
    %cst_112 = arith.constant 2.000000e-01 : f32
    %273 = vector.broadcast %cst_112 : f32 to vector<2x64xf32>
    %274 = arith.mulf %273, %270 : vector<2x64xf32>
    %275 = arith.select %272, %270, %274 : vector<2x64xi1>, vector<2x64xf32>
    %c2_113 = arith.constant 2 : index
    %c0_114 = arith.constant 0 : index
    %c256_115 = arith.constant 256 : index
    %276 = vector.load %arg3[%c2_113, %c0_114, %c256_115] : memref<3x64x384xbf16, #tpu.memory_space<vmem>>, vector<1x64x64xbf16>
    %277 = vector.shape_cast %276 : vector<1x64x64xbf16> to vector<64x64xbf16>
    %278 = arith.truncf %275 : vector<2x64xf32> to vector<2x64xbf16>
    %cst_116 = arith.constant dense<0.000000e+00> : vector<2x64xf32>
    %279 = tpu.matmul %278, %277, %cst_116 {dimension_numbers = #tpu.dot_dimension_numbers<[1], [0], [0], [1], [0, 0, 1, 1], [], []>} : vector<2x64xbf16>, vector<64x64xbf16>, vector<2x64xf32> -> vector<2x64xf32>
    %280 = vector.broadcast %250 : vector<1x64xf32> to vector<2x64xf32>
    %281 = arith.addf %279, %280 : vector<2x64xf32>
    %c2_117 = arith.constant 2 : index
    %c0_118 = arith.constant 0 : index
    %c0_119 = arith.constant 0 : index
    %282 = vector.load %arg4[%c2_117, %c0_118, %c0_119] : memref<3x32x384xbf16, #tpu.memory_space<vmem>>, vector<1x32x64xbf16>
    %283 = vector.shape_cast %282 : vector<1x32x64xbf16> to vector<32x64xbf16>
    %284 = arith.truncf %247 : vector<6x32xf32> to vector<6x32xbf16>
    %cst_120 = arith.constant dense<0.000000e+00> : vector<6x64xf32>
    %285 = tpu.matmul %284, %283, %cst_120 {dimension_numbers = #tpu.dot_dimension_numbers<[1], [0], [0], [1], [0, 0, 1, 1], [], []>} : vector<6x32xbf16>, vector<32x64xbf16>, vector<6x64xf32> -> vector<6x64xf32>
    %286 = vector.extract_strided_slice %285 {offsets = [0, 0], sizes = [6, 32], strides = [1, 1]} : vector<6x64xf32> to vector<6x32xf32>
    %287 = vector.extract_strided_slice %286 {offsets = [0, 0], sizes = [2, 32], strides = [1, 1]} : vector<6x32xf32> to vector<2x32xf32>
    %288 = vector.extract_strided_slice %286 {offsets = [2, 0], sizes = [2, 32], strides = [1, 1]} : vector<6x32xf32> to vector<2x32xf32>
    %289 = vector.extract_strided_slice %286 {offsets = [4, 0], sizes = [2, 32], strides = [1, 1]} : vector<6x32xf32> to vector<2x32xf32>
    %290 = arith.mulf %287, %287 : vector<2x32xf32>
    %291 = arith.mulf %288, %288 : vector<2x32xf32>
    %292 = arith.addf %290, %291 : vector<2x32xf32>
    %293 = arith.mulf %289, %289 : vector<2x32xf32>
    %294 = arith.addf %292, %293 : vector<2x32xf32>
    %295 = math.sqrt %294 : vector<2x32xf32>
    %cst_121 = arith.constant 1.000000e+00 : f32
    %296 = vector.broadcast %cst_121 : f32 to vector<2x32xf32>
    %297 = arith.addf %296, %295 : vector<2x32xf32>
    %298 = math.rsqrt %297 : vector<2x32xf32>
    %299 = tpu.concatenate %298, %298, %298 in 0 : vector<2x32xf32>, vector<2x32xf32>, vector<2x32xf32> -> vector<6x32xf32>
    %300 = arith.mulf %286, %299 : vector<6x32xf32>
    %301 = vector.extract_strided_slice %285 {offsets = [0, 32], sizes = [6, 16], strides = [1, 1]} : vector<6x64xf32> to vector<6x16xf32>
    %302 = vector.extract_strided_slice %285 {offsets = [0, 48], sizes = [6, 16], strides = [1, 1]} : vector<6x64xf32> to vector<6x16xf32>
    %c2_122 = arith.constant 2 : index
    %c0_123 = arith.constant 0 : index
    %c128_124 = arith.constant 128 : index
    %303 = vector.load %arg4[%c2_122, %c0_123, %c128_124] : memref<3x32x384xbf16, #tpu.memory_space<vmem>>, vector<1x32x32xbf16>
    %304 = vector.shape_cast %303 : vector<1x32x32xbf16> to vector<32x32xbf16>
    %305 = arith.truncf %300 : vector<6x32xf32> to vector<6x32xbf16>
    %cst_125 = arith.constant dense<0.000000e+00> : vector<6x32xf32>
    %306 = tpu.matmul %305, %304, %cst_125 {dimension_numbers = #tpu.dot_dimension_numbers<[1], [0], [0], [1], [0, 0, 1, 1], [], []>} : vector<6x32xbf16>, vector<32x32xbf16>, vector<6x32xf32> -> vector<6x32xf32>
    %307 = vector.extract_strided_slice %306 {offsets = [0, 0], sizes = [2, 32], strides = [1, 1]} : vector<6x32xf32> to vector<2x32xf32>
    %308 = vector.extract_strided_slice %306 {offsets = [2, 0], sizes = [2, 32], strides = [1, 1]} : vector<6x32xf32> to vector<2x32xf32>
    %309 = vector.extract_strided_slice %306 {offsets = [4, 0], sizes = [2, 32], strides = [1, 1]} : vector<6x32xf32> to vector<2x32xf32>
    %310 = arith.mulf %307, %307 : vector<2x32xf32>
    %311 = arith.mulf %308, %308 : vector<2x32xf32>
    %312 = arith.addf %310, %311 : vector<2x32xf32>
    %313 = arith.mulf %309, %309 : vector<2x32xf32>
    %314 = arith.addf %312, %313 : vector<2x32xf32>
    %315 = math.sqrt %314 : vector<2x32xf32>
    %cst_126 = arith.constant 1.000000e+00 : f32
    %316 = vector.broadcast %cst_126 : f32 to vector<2x32xf32>
    %317 = arith.addf %316, %315 : vector<2x32xf32>
    %318 = math.rsqrt %317 : vector<2x32xf32>
    %319 = tpu.concatenate %318, %318, %318 in 0 : vector<2x32xf32>, vector<2x32xf32>, vector<2x32xf32> -> vector<6x32xf32>
    %320 = arith.mulf %306, %319 : vector<6x32xf32>
    %c2_127 = arith.constant 2 : index
    %c0_128 = arith.constant 0 : index
    %c256_129 = arith.constant 256 : index
    %321 = vector.load %arg4[%c2_127, %c0_128, %c256_129] : memref<3x32x384xbf16, #tpu.memory_space<vmem>>, vector<1x32x32xbf16>
    %322 = vector.shape_cast %321 : vector<1x32x32xbf16> to vector<32x32xbf16>
    %323 = arith.truncf %320 : vector<6x32xf32> to vector<6x32xbf16>
    %cst_130 = arith.constant dense<0.000000e+00> : vector<6x32xf32>
    %324 = tpu.matmul %323, %322, %cst_130 {dimension_numbers = #tpu.dot_dimension_numbers<[1], [0], [0], [1], [0, 0, 1, 1], [], []>} : vector<6x32xbf16>, vector<32x32xbf16>, vector<6x32xf32> -> vector<6x32xf32>
    %325 = vector.extract_strided_slice %301 {offsets = [0, 0], sizes = [2, 16], strides = [1, 1]} : vector<6x16xf32> to vector<2x16xf32>
    %326 = vector.extract_strided_slice %302 {offsets = [0, 0], sizes = [2, 16], strides = [1, 1]} : vector<6x16xf32> to vector<2x16xf32>
    %327 = arith.mulf %325, %326 : vector<2x16xf32>
    %328 = vector.extract_strided_slice %301 {offsets = [2, 0], sizes = [2, 16], strides = [1, 1]} : vector<6x16xf32> to vector<2x16xf32>
    %329 = vector.extract_strided_slice %302 {offsets = [2, 0], sizes = [2, 16], strides = [1, 1]} : vector<6x16xf32> to vector<2x16xf32>
    %330 = arith.mulf %328, %329 : vector<2x16xf32>
    %331 = arith.addf %327, %330 : vector<2x16xf32>
    %332 = vector.extract_strided_slice %301 {offsets = [4, 0], sizes = [2, 16], strides = [1, 1]} : vector<6x16xf32> to vector<2x16xf32>
    %333 = vector.extract_strided_slice %302 {offsets = [4, 0], sizes = [2, 16], strides = [1, 1]} : vector<6x16xf32> to vector<2x16xf32>
    %334 = arith.mulf %332, %333 : vector<2x16xf32>
    %335 = arith.addf %331, %334 : vector<2x16xf32>
    %336 = arith.mulf %263, %264 : vector<2x16xf32>
    %337 = arith.addf %336, %335 : vector<2x16xf32>
    %c2_131 = arith.constant 2 : index
    %c0_132 = arith.constant 0 : index
    %c0_133 = arith.constant 0 : index
    %338 = vector.load %arg5[%c2_131, %c0_132, %c0_133] : memref<3x16x256xbf16, #tpu.memory_space<vmem>>, vector<1x16x64xbf16>
    %339 = vector.shape_cast %338 : vector<1x16x64xbf16> to vector<16x64xbf16>
    %340 = arith.truncf %337 : vector<2x16xf32> to vector<2x16xbf16>
    %cst_134 = arith.constant dense<0.000000e+00> : vector<2x64xf32>
    %341 = tpu.matmul %340, %339, %cst_134 {dimension_numbers = #tpu.dot_dimension_numbers<[1], [0], [0], [1], [0, 0, 1, 1], [], []>} : vector<2x16xbf16>, vector<16x64xbf16>, vector<2x64xf32> -> vector<2x64xf32>
    %342 = tpu.concatenate %263, %263, %263 in 0 : vector<2x16xf32>, vector<2x16xf32>, vector<2x16xf32> -> vector<6x16xf32>
    %343 = arith.mulf %342, %302 : vector<6x16xf32>
    %c2_135 = arith.constant 2 : index
    %c0_136 = arith.constant 0 : index
    %c128_137 = arith.constant 128 : index
    %344 = vector.load %arg5[%c2_135, %c0_136, %c128_137] : memref<3x16x256xbf16, #tpu.memory_space<vmem>>, vector<1x16x32xbf16>
    %345 = vector.shape_cast %344 : vector<1x16x32xbf16> to vector<16x32xbf16>
    %346 = arith.truncf %343 : vector<6x16xf32> to vector<6x16xbf16>
    %cst_138 = arith.constant dense<0.000000e+00> : vector<6x32xf32>
    %347 = tpu.matmul %346, %345, %cst_138 {dimension_numbers = #tpu.dot_dimension_numbers<[1], [0], [0], [1], [0, 0, 1, 1], [], []>} : vector<6x16xbf16>, vector<16x32xbf16>, vector<6x32xf32> -> vector<6x32xf32>
    %348 = arith.addf %281, %341 : vector<2x64xf32>
    %cst_139 = arith.constant 5.000000e-01 : f32
    %349 = vector.broadcast %cst_139 : f32 to vector<2x64xf32>
    %350 = arith.mulf %348, %349 : vector<2x64xf32>
    %351 = arith.addf %243, %350 : vector<2x64xf32>
    %352 = arith.addf %324, %347 : vector<6x32xf32>
    %cst_140 = arith.constant 5.000000e-02 : f32
    %353 = vector.broadcast %cst_140 : f32 to vector<6x32xf32>
    %354 = arith.mulf %352, %353 : vector<6x32xf32>
    %355 = arith.addf %247, %354 : vector<6x32xf32>
    %356 = vector.extract_strided_slice %355 {offsets = [0, 0], sizes = [2, 32], strides = [1, 1]} : vector<6x32xf32> to vector<2x32xf32>
    %357 = arith.mulf %356, %356 : vector<2x32xf32>
    %358 = vector.extract_strided_slice %355 {offsets = [2, 0], sizes = [2, 32], strides = [1, 1]} : vector<6x32xf32> to vector<2x32xf32>
    %359 = arith.mulf %358, %358 : vector<2x32xf32>
    %360 = arith.addf %357, %359 : vector<2x32xf32>
    %361 = vector.extract_strided_slice %355 {offsets = [4, 0], sizes = [2, 32], strides = [1, 1]} : vector<6x32xf32> to vector<2x32xf32>
    %362 = arith.mulf %361, %361 : vector<2x32xf32>
    %363 = arith.addf %360, %362 : vector<2x32xf32>
    %364 = math.sqrt %363 : vector<2x32xf32>
    %365 = tpu.concatenate %351, %364 in 1 : vector<2x64xf32>, vector<2x32xf32> -> vector<2x96xf32>
    %c0_141 = arith.constant 0 : index
    %c0_142 = arith.constant 0 : index
    %366 = vector.load %arg6[%c0_141, %c0_142] : memref<96x2xbf16, #tpu.memory_space<vmem>>, vector<96x2xbf16>
    %367 = arith.truncf %365 : vector<2x96xf32> to vector<2x96xbf16>
    %cst_143 = arith.constant dense<0.000000e+00> : vector<2x2xf32>
    %368 = tpu.matmul %367, %366, %cst_143 {dimension_numbers = #tpu.dot_dimension_numbers<[1], [0], [0], [1], [0, 0, 1, 1], [], []>} : vector<2x96xbf16>, vector<96x2xbf16>, vector<2x2xf32> -> vector<2x2xf32>
    %c11 = arith.constant 11 : index
    %c0_144 = arith.constant 0 : index
    %369 = vector.load %arg7[%c11, %c0_144] : memref<12x256xf32, #tpu.memory_space<vmem>>, vector<1x2xf32>
    %370 = vector.broadcast %369 : vector<1x2xf32> to vector<2x2xf32>
    %371 = arith.addf %368, %370 : vector<2x2xf32>
    %c0_145 = arith.constant 0 : index
    %c0_146 = arith.constant 0 : index
    %372 = vector.load %arg8[%c0_145, %c0_146] : memref<2x2xf32, #tpu.memory_space<vmem>>, vector<2x2xf32>
    tpu.vector_store %arg8[%c0_145, %c0_146], %371 {strides = array<i32>} : memref<2x2xf32, #tpu.memory_space<vmem>>, vector<2x2xf32>,
    return
  }
}

</mosaic_0001>

<llo_original>
// kernel: discriminator_forward.1
$region0: #{discriminator_forward.1}
  #allocation0 [shape = 'u32[]', space=smem, size = 0x4, offset = 0x4, fixed_abs, tag = 'smem constant byte address 0x4 - core index']
  #allocation1 [shape = 'u32[144,128]{1,0:T(1,128)}', space=vmem, size = 0x12000, scoped, tag = 'internal scratch']
  %s0 = inlined_call_operand.vmem [shape: f32[6,8], index: 0, kind: input, shape index: {}]
  %s1 = inlined_call_operand.hbm [shape: bf16[8,288], index: 1, kind: input, shape index: {}]
  %s2 = inlined_call_operand.vmem [shape: bf16[256,64], index: 2, kind: input, shape index: {}]
  %s3 = inlined_call_operand.vmem [shape: bf16[3,64,384], index: 3, kind: input, shape index: {}]
  %s4 = inlined_call_operand.hbm [shape: bf16[3,32,384], index: 4, kind: input, shape index: {}]
  %s5 = inlined_call_operand.hbm [shape: bf16[3,16,256], index: 5, kind: input, shape index: {}]
  %s6 = inlined_call_operand.vmem [shape: bf16[96,2], index: 6, kind: input, shape index: {}]
  %s7 = inlined_call_operand.hbm [shape: f32[12,256], index: 7, kind: input, shape index: {}]
  %s8 = inlined_call_operand.hbm [shape: f32[2,2], index: 8, kind: output, shape index: {}]
  %s9 = sld [smem:[#allocation0]]
  $region58: #{discriminator_forward.1} parent=0
    _
  %s11 = ssub.s32 1, %s9
  %s12 = scalar_select 0, %s11, %s9
  $region1: #{discriminator_forward.1} parent=0
    #allocation2 [shape = 'u8[6144]{0}', space=vmem, size = 0x1800, scoped, tag = 'input window, operand 1, single buffered']
    #allocation3 [shape = 's32[1]{0}', space=sflag, size = 0x4, scoped, tag = 'scoped memory for discriminator_forward.1']
    #allocation4 [shape = 's32[1]{0}', space=sflag, size = 0x4, scoped, tag = 'scoped memory for discriminator_forward.1']
    #allocation5 [shape = 'u8[73728]{0}', space=vmem, size = 0x12000, scoped, tag = 'input window, operand 4, single buffered']
    #allocation6 [shape = 's32[1]{0}', space=sflag, size = 0x4, scoped, tag = 'scoped memory for discriminator_forward.1']
    #allocation7 [shape = 'u8[24576]{0}', space=vmem, size = 0x6000, scoped, tag = 'input window, operand 5, single buffered']
    #allocation8 [shape = 'u8[16384]{0}', space=vmem, size = 0x4000, scoped, tag = 'input window, operand 7, single buffered']
    #allocation9 [shape = 's32[1]{0}', space=sflag, size = 0x4, scoped, tag = 'scoped memory for discriminator_forward.1']
    #allocation10 [shape = 'u8[1024]{0}', space=vmem, size = 0x400, scoped, tag = 'output window, operand 0, single buffered']
    %13 = vsyncpa [#allocation3], 0
    %14 = vsyncpa [#allocation6], 0
    %15 = vsyncpa [#allocation9], 0
    %16 = vsyncpa [#allocation4], 0
    // Predicated region
    $region2: #{discriminator_forward.1} parent=1 // pred_check
      _
    $region3: #{discriminator_forward.1} parent=1 // pred_check_branch
      %18 = sbr.rel (0) target = $region5
    $region4: #{discriminator_forward.1} parent=1 // pred_region
      _
    $region5: #{discriminator_forward.1} parent=1 // pred_fallthru
      _
    // Predicated region
    $region6: #{discriminator_forward.1} parent=1 // pred_check
      _
    $region7: #{discriminator_forward.1} parent=1 // pred_check_branch
      %20 = sbr.rel (0) target = $region9
    $region8: #{discriminator_forward.1} parent=1 // pred_region
      %s22 = ssub.s32 192, 192
      %23 = vsyncadd [#allocation3], %s22
      %s25 = sshll.u32 [#allocation2], 4
      %s26 = int_to_ptr.vmem [resolvable:$true] %s25
      %28 = dma.hbm_to_vmem [thread:$0]  %s1, 192, %s26, [#allocation3]
    $region9: #{discriminator_forward.1} parent=1 // pred_fallthru
      _
    // Predicated region
    $region10: #{discriminator_forward.1} parent=1 // pred_check
      _
    $region11: #{discriminator_forward.1} parent=1 // pred_check_branch
      %30 = sbr.rel (0) target = $region13
    $region12: #{discriminator_forward.1} parent=1 // pred_region
      _
    $region13: #{discriminator_forward.1} parent=1 // pred_fallthru
      _
    // Predicated region
    $region14: #{discriminator_forward.1} parent=1 // pred_check
      _
    $region15: #{discriminator_forward.1} parent=1 // pred_check_branch
      %32 = sbr.rel (0) target = $region17
    $region16: #{discriminator_forward.1} parent=1 // pred_region
      _
    $region17: #{discriminator_forward.1} parent=1 // pred_fallthru
      _
    // Predicated region
    $region18: #{discriminator_forward.1} parent=1 // pred_check
      _
    $region19: #{discriminator_forward.1} parent=1 // pred_check_branch
      %34 = sbr.rel (0) target = $region21
    $region20: #{discriminator_forward.1} parent=1 // pred_region
      %s36 = ssub.s32 2304, 2304
      %37 = vsyncadd [#allocation6], %s36
      %s38 = sshll.u32 [#allocation5], 4
      %s39 = int_to_ptr.vmem [resolvable:$true] %s38
      %44 = dma.hbm_to_vmem [thread:$0]  %s4, 2304, %s39, [#allocation6], 192, 192, 12
    $region21: #{discriminator_forward.1} parent=1 // pred_fallthru
      _
    // Predicated region
    $region22: #{discriminator_forward.1} parent=1 // pred_check
      _
    $region23: #{discriminator_forward.1} parent=1 // pred_check_branch
      %46 = sbr.rel (0) target = $region25
    $region24: #{discriminator_forward.1} parent=1 // pred_region
      %s48 = ssub.s32 768, 768
      %49 = vsyncadd [#allocation6], %s48
      %s50 = sshll.u32 [#allocation7], 4
      %s51 = int_to_ptr.vmem [resolvable:$true] %s50
      %56 = dma.hbm_to_vmem [thread:$0]  %s5, 768, %s51, [#allocation6], 128, 128, 8
    $region25: #{discriminator_forward.1} parent=1 // pred_fallthru
      _
    // Predicated region
    $region26: #{discriminator_forward.1} parent=1 // pred_check
      _
    $region27: #{discriminator_forward.1} parent=1 // pred_check_branch
      %58 = sbr.rel (0) target = $region29
    $region28: #{discriminator_forward.1} parent=1 // pred_region
      _
    $region29: #{discriminator_forward.1} parent=1 // pred_fallthru
      _
    // Predicated region
    $region30: #{discriminator_forward.1} parent=1 // pred_check
      _
    $region31: #{discriminator_forward.1} parent=1 // pred_check_branch
      %60 = sbr.rel (0) target = $region33
    $region32: #{discriminator_forward.1} parent=1 // pred_region
      %s62 = ssub.s32 512, 512
      %63 = vsyncadd [#allocation9], %s62
      %s64 = sshll.u32 [#allocation8], 4
      %s65 = int_to_ptr.vmem [resolvable:$true] %s64
      %70 = dma.hbm_to_vmem [thread:$0]  %s7, 512, %s65, [#allocation9], 256, 256, 16
    $region33: #{discriminator_forward.1} parent=1 // pred_fallthru
      _
    // Predicated region
    $region34: #{discriminator_forward.1} parent=1 // pred_check
      _
    $region35: #{discriminator_forward.1} parent=1 // pred_check_branch
      %72 = sbr.rel (0) target = $region37
    $region36: #{discriminator_forward.1} parent=1 // pred_region
      %73 = dma.done [#allocation3], 192
    $region37: #{discriminator_forward.1} parent=1 // pred_fallthru
      _
    // Predicated region
    $region38: #{discriminator_forward.1} parent=1 // pred_check
      _
    $region39: #{discriminator_forward.1} parent=1 // pred_check_branch
      %75 = sbr.rel (0) target = $region41
    $region40: #{discriminator_forward.1} parent=1 // pred_region
      %76 = dma.done [#allocation6], 2304
    $region41: #{discriminator_forward.1} parent=1 // pred_fallthru
      _
    // Predicated region
    $region42: #{discriminator_forward.1} parent=1 // pred_check
      _
    $region43: #{discriminator_forward.1} parent=1 // pred_check_branch
      %78 = sbr.rel (0) target = $region45
    $region44: #{discriminator_forward.1} parent=1 // pred_region
      %79 = dma.done [#allocation6], 768
    $region45: #{discriminator_forward.1} parent=1 // pred_fallthru
      _
    // Predicated region
    $region46: #{discriminator_forward.1} parent=1 // pred_check
      _
    $region47: #{discriminator_forward.1} parent=1 // pred_check_branch
      %81 = sbr.rel (0) target = $region49
    $region48: #{discriminator_forward.1} parent=1 // pred_region
      %82 = dma.done [#allocation9], 512
    $region49: #{discriminator_forward.1} parent=1 // pred_fallthru
      _
    %v84 = vld [vmem:[%s0] sm:$0x3f]
    %v85 = vmul.f32 %v84, %v84
    %v87 = vrot.slane %v85, 2
    %v89 = vadd.f32 %v85, %v87
    %v90 = vrot.slane %v85, 4
    %v92 = vadd.f32 %v89, %v90
    %v93 = vrsqrt.pop %v92
    %v94 = vmul.f32 %v92, %v93
    %vm95 = vcmp.eq.f32.partialorder %v92, inf
    %v96 = vsel %vm95, %v92, %v94
    %vm97 = vcmp.eq.f32.partialorder %v92, 0.0
    %v98 = vand.u32 %v92, 2147483648
    %v99 = vsel %vm97, %v98, %v96
    %v101 = vrot.slane %v99, 6
    %v103 = vrot.slane %v99, 4
    %vm105 = vcmask 1041408
    %v106 = vsel %vm105, %v99, %v101
    %vm107 = vcmask 1043456
    %v108 = vsel %vm107, %v106, %v103
    %v109 = vld [vmem:[#allocation2] sm:$0xff]
    %v110 = vpack.c.bf16 %v99, %v99
    %v111 = vld [vmem:[#allocation8] ss:$8 sm:$0x3]
    %v113 = vlaneseq
    %v114 = vshrl.u32 %v113, 7
    %v115 = vsub.s32 0, %v114
    %v116 = vrot.slane %v111, %v115
    %v117 = vlaneseq
    %v118 = vshrl.u32 %v117, 7
    %v119 = vsub.s32 1, %v118
    %v120 = vrot.slane %v111, %v119
    %v124 = vunpack.c.l.b16 %v109
    %v125 = vunpack.c.h.b16 %v109
    %v126 = vpack.c.b16 %v124, %v124
    %v127 = vpack.c.b16 %v125, %v125
    %vm128 = vcmask 64512
    %v130 = vsel %vm128, %v110, 0
    %v133 = vsel %vm107, %v126, 0
    %v136 = vsel %vm107, %v127, 0
    %138 = vmatprep.subr.bf16.mxu0 %v136
    %139 = vmatpush1.bf16.msra.mxu0 %v133
    %140 = vmatprep.subr.bf16.mxu0 0
    %141 = vmatpush1.bf16.msra.mxu0 0
    %142 = vmatprep.subr.bf16.mxu0 0
    %143 = vmatpush1.bf16.msra.mxu0 0
    %144 = vmatprep.subr.bf16.mxu0 0
    %145 = vmatpush1.bf16.msra.mxu0 0
    %146 = vmatprep.subr.bf16.mxu0 0
    %147 = vmatpush1.bf16.msra.mxu0 0
    %148 = vmatprep.subr.bf16.mxu0 0
    %149 = vmatpush1.bf16.msra.mxu0 0
    %150 = vmatprep.subr.bf16.mxu0 0
    %151 = vmatpush1.bf16.msra.mxu0 0
    %152 = vmatprep.subr.bf16.mxu0 0
    %153 = vmatpush1.bf16.msra.mxu0 0
    %154 = vmatprep.subr.bf16.mxu0 0
    %155 = vmatpush1.bf16.msra.mxu0 0
    %156 = vmatprep.subr.bf16.mxu0 0
    %157 = vmatpush1.bf16.msra.mxu0 0
    %158 = vmatprep.subr.bf16.mxu0 0
    %159 = vmatpush1.bf16.msra.mxu0 0
    %160 = vmatprep.subr.bf16.mxu0 0
    %161 = vmatpush1.bf16.msra.mxu0 0
    %162 = vmatprep.subr.bf16.mxu0 0
    %163 = vmatpush1.bf16.msra.mxu0 0
    %164 = vmatprep.subr.bf16.mxu0 0
    %165 = vmatpush1.bf16.msra.mxu0 0
    %166 = vmatprep.subr.bf16.mxu0 0
    %167 = vmatpush1.bf16.msra.mxu0 0
    %168 = vmatprep.subr.bf16.mxu0 0
    %169 = vmatpush1.bf16.msra.mxu0 0
    %170 = vmatprep.mubr.bf16.mxu0 0
    %171 = vmatmul.mubr.bf16.gmra.mrb[0].mxu0 %v130
    %v172 = vpop.f32.mrb[0].mxu0
    %v173 = vadd.f32 %v116, %v172
    %v174 = vpop.f32.mrb[0].mxu0
    %v175 = vadd.f32 %v120, %v174
    %v176 = vpop.f32.mrb[0].mxu0
    %v177 = vpop.f32.mrb[0].mxu0
    %178 = vdwg.mxu0
    %vm179 = vcmp.gt.f32.partialorder %v173, 0.0
    %vm180 = vcmp.gt.f32.partialorder %v175, 0.0
    %v181 = vmul.f32 %v173, 0.2
    %v182 = vmul.f32 %v175, 0.2
    %v183 = vsel %vm179, %v173, %v181
    %v184 = vsel %vm180, %v175, %v182
    %v185 = vld [vmem:[%s2] sm:$0xf]
    %v186 = vld [vmem:[%s2 + $0x4] sm:$0xf]
    %v187 = vld [vmem:[%s2 + $0x8] sm:$0xf]
    %v188 = vld [vmem:[%s2 + $0xc] sm:$0xf]
    %v189 = vld [vmem:[%s2 + $0x10] sm:$0xf]
    %v190 = vld [vmem:[%s2 + $0x14] sm:$0xf]
    %v191 = vld [vmem:[%s2 + $0x18] sm:$0xf]
    %v192 = vld [vmem:[%s2 + $0x1c] sm:$0xf]
    %v193 = vld [vmem:[%s2 + $0x20] sm:$0xf]
    %v194 = vld [vmem:[%s2 + $0x24] sm:$0xf]
    %v195 = vld [vmem:[%s2 + $0x28] sm:$0xf]
    %v196 = vld [vmem:[%s2 + $0x2c] sm:$0xf]
    %v197 = vld [vmem:[%s2 + $0x30] sm:$0xf]
    %v198 = vld [vmem:[%s2 + $0x34] sm:$0xf]
    %v199 = vld [vmem:[%s2 + $0x38] sm:$0xf]
    %v200 = vld [vmem:[%s2 + $0x3c] sm:$0xf]
    %v201 = vld [vmem:[%s2 + $0x40] sm:$0xf]
    %v202 = vld [vmem:[%s2 + $0x44] sm:$0xf]
    %v203 = vld [vmem:[%s2 + $0x48] sm:$0xf]
    %v204 = vld [vmem:[%s2 + $0x4c] sm:$0xf]
    %v205 = vld [vmem:[%s2 + $0x50] sm:$0xf]
    %v206 = vld [vmem:[%s2 + $0x54] sm:$0xf]
    %v207 = vld [vmem:[%s2 + $0x58] sm:$0xf]
    %v208 = vld [vmem:[%s2 + $0x5c] sm:$0xf]
    %v209 = vld [vmem:[%s2 + $0x60] sm:$0xf]
    %v210 = vld [vmem:[%s2 + $0x64] sm:$0xf]
    %v211 = vld [vmem:[%s2 + $0x68] sm:$0xf]
    %v212 = vld [vmem:[%s2 + $0x6c] sm:$0xf]
    %v213 = vld [vmem:[%s2 + $0x70] sm:$0xf]
    %v214 = vld [vmem:[%s2 + $0x74] sm:$0xf]
    %v215 = vld [vmem:[%s2 + $0x78] sm:$0xf]
    %v216 = vld [vmem:[%s2 + $0x7c] sm:$0xf]
    %v217 = vpack.c.bf16 %v183, %v183
    %v218 = vpack.c.bf16 %v184, %v184
    %v219 = vld [vmem:[#allocation8 + $0x1] ss:$0 sm:$0xff]
    %v252 = vunpack.c.l.b16 %v185
    %v253 = vunpack.c.l.b16 %v186
    %v254 = vunpack.c.l.b16 %v187
    %v255 = vunpack.c.l.b16 %v188
    %v256 = vunpack.c.l.b16 %v189
    %v257 = vunpack.c.l.b16 %v190
    %v258 = vunpack.c.l.b16 %v191
    %v259 = vunpack.c.l.b16 %v192
    %v260 = vunpack.c.l.b16 %v193
    %v261 = vunpack.c.l.b16 %v194
    %v262 = vunpack.c.l.b16 %v195
    %v263 = vunpack.c.l.b16 %v196
    %v264 = vunpack.c.l.b16 %v197
    %v265 = vunpack.c.l.b16 %v198
    %v266 = vunpack.c.l.b16 %v199
    %v267 = vunpack.c.l.b16 %v200
    %v268 = vunpack.c.l.b16 %v201
    %v269 = vunpack.c.l.b16 %v202
    %v270 = vunpack.c.l.b16 %v203
    %v271 = vunpack.c.l.b16 %v204
    %v272 = vunpack.c.l.b16 %v205
    %v273 = vunpack.c.l.b16 %v206
    %v274 = vunpack.c.l.b16 %v207
    %v275 = vunpack.c.l.b16 %v208
    %v276 = vunpack.c.l.b16 %v209
    %v277 = vunpack.c.l.b16 %v210
    %v278 = vunpack.c.l.b16 %v211
    %v279 = vunpack.c.l.b16 %v212
    %v280 = vunpack.c.l.b16 %v213
    %v281 = vunpack.c.l.b16 %v214
    %v282 = vunpack.c.l.b16 %v215
    %v283 = vunpack.c.l.b16 %v216
    %v284 = vpack.c.b16 %v253, %v252
    %v285 = vpack.c.b16 %v255, %v254
    %v286 = vpack.c.b16 %v257, %v256
    %v287 = vpack.c.b16 %v259, %v258
    %v288 = vpack.c.b16 %v261, %v260
    %v289 = vpack.c.b16 %v263, %v262
    %v290 = vpack.c.b16 %v265, %v264
    %v291 = vpack.c.b16 %v267, %v266
    %v292 = vpack.c.b16 %v269, %v268
    %v293 = vpack.c.b16 %v271, %v270
    %v294 = vpack.c.b16 %v273, %v272
    %v295 = vpack.c.b16 %v275, %v274
    %v296 = vpack.c.b16 %v277, %v276
    %v297 = vpack.c.b16 %v279, %v278
    %v298 = vpack.c.b16 %v281, %v280
    %v299 = vpack.c.b16 %v283, %v282
    %316 = vmatprep.subr.bf16.mxu0 0
    %317 = vmatpush1.bf16.msra.mxu0 %v284
    %318 = vmatprep.subr.bf16.mxu0 0
    %319 = vmatpush1.bf16.msra.mxu0 %v285
    %320 = vmatprep.subr.bf16.mxu0 0
    %321 = vmatpush1.bf16.msra.mxu0 %v286
    %322 = vmatprep.subr.bf16.mxu0 0
    %323 = vmatpush1.bf16.msra.mxu0 %v287
    %324 = vmatprep.subr.bf16.mxu0 0
    %325 = vmatpush1.bf16.msra.mxu0 %v288
    %326 = vmatprep.subr.bf16.mxu0 0
    %327 = vmatpush1.bf16.msra.mxu0 %v289
    %328 = vmatprep.subr.bf16.mxu0 0
    %329 = vmatpush1.bf16.msra.mxu0 %v290
    %330 = vmatprep.subr.bf16.mxu0 0
    %331 = vmatpush1.bf16.msra.mxu0 %v291
    %332 = vmatprep.subr.bf16.mxu0 0
    %333 = vmatpush1.bf16.msra.mxu0 %v292
    %334 = vmatprep.subr.bf16.mxu0 0
    %335 = vmatpush1.bf16.msra.mxu0 %v293
    %336 = vmatprep.subr.bf16.mxu0 0
    %337 = vmatpush1.bf16.msra.mxu0 %v294
    %338 = vmatprep.subr.bf16.mxu0 0
    %339 = vmatpush1.bf16.msra.mxu0 %v295
    %340 = vmatprep.subr.bf16.mxu0 0
    %341 = vmatpush1.bf16.msra.mxu0 %v296
    %342 = vmatprep.subr.bf16.mxu0 0
    %343 = vmatpush1.bf16.msra.mxu0 %v297
    %344 = vmatprep.subr.bf16.mxu0 0
    %345 = vmatpush1.bf16.msra.mxu0 %v298
    %346 = vmatprep.subr.bf16.mxu0 0
    %347 = vmatpush1.bf16.msra.mxu0 %v299
    %348 = vmatprep.mubr.bf16.mxu0 %v218
    %349 = vmatmul.mubr.bf16.gmra.mrb[0].mxu0 %v217
    %v350 = vpop.f32.mrb[0].mxu0
    %v351 = vadd.f32 %v219, %v350
    %v352 = vpop.f32.mrb[0].mxu0
    %v353 = vpop.f32.mrb[0].mxu0
    %v354 = vpop.f32.mrb[0].mxu0
    %355 = vdwg.mxu0
    %v356 = vmul.f32 %v84, %v108
    %v357 = vld [vmem:[#allocation2 + $0x8] sm:$0xf]
    %v358 = vpack.c.bf16 %v356, %v356
    %v360 = vsel %vm128, %v358, 0
    %v363 = vsel %vm107, %v357, 0
    %365 = vmatprep.subr.bf16.mxu0 0
    %366 = vmatpush1.bf16.msra.mxu0 %v363
    %367 = vmatprep.subr.bf16.mxu0 0
    %368 = vmatpush1.bf16.msra.mxu0 0
    %369 = vmatprep.subr.bf16.mxu0 0
    %370 = vmatpush1.bf16.msra.mxu0 0
    %371 = vmatprep.subr.bf16.mxu0 0
    %372 = vmatpush1.bf16.msra.mxu0 0
    %373 = vmatprep.subr.bf16.mxu0 0
    %374 = vmatpush1.bf16.msra.mxu0 0
    %375 = vmatprep.subr.bf16.mxu0 0
    %376 = vmatpush1.bf16.msra.mxu0 0
    %377 = vmatprep.subr.bf16.mxu0 0
    %378 = vmatpush1.bf16.msra.mxu0 0
    %379 = vmatprep.subr.bf16.mxu0 0
    %380 = vmatpush1.bf16.msra.mxu0 0
    %381 = vmatprep.subr.bf16.mxu0 0
    %382 = vmatpush1.bf16.msra.mxu0 0
    %383 = vmatprep.subr.bf16.mxu0 0
    %384 = vmatpush1.bf16.msra.mxu0 0
    %385 = vmatprep.subr.bf16.mxu0 0
    %386 = vmatpush1.bf16.msra.mxu0 0
    %387 = vmatprep.subr.bf16.mxu0 0
    %388 = vmatpush1.bf16.msra.mxu0 0
    %389 = vmatprep.subr.bf16.mxu0 0
    %390 = vmatpush1.bf16.msra.mxu0 0
    %391 = vmatprep.subr.bf16.mxu0 0
    %392 = vmatpush1.bf16.msra.mxu0 0
    %393 = vmatprep.subr.bf16.mxu0 0
    %394 = vmatpush1.bf16.msra.mxu0 0
    %395 = vmatprep.subr.bf16.mxu0 0
    %396 = vmatpush1.bf16.msra.mxu0 0
    %397 = vmatprep.mubr.bf16.mxu0 0
    %398 = vmatmul.mubr.bf16.gmra.mrb[0].mxu0 %v360
    %v399 = vpop.f32.mrb[0].mxu0
    %v400 = vadd.f32 0.0, %v399
    %v401 = vpop.f32.mrb[0].mxu0
    %v402 = vpop.f32.mrb[0].mxu0
    %v403 = vpop.f32.mrb[0].mxu0
    %404 = vdwg.mxu0
    %v405 = vld [vmem:[#allocation8 + $0x2] ss:$0 sm:$0xff]
    %v406 = vld [vmem:[#allocation8 + $0x3] ss:$0 sm:$0xff]
    %v407 = vld [vmem:[#allocation8 + $0x4] ss:$0 sm:$0xff]
    %v408 = vld [vmem:[%s3] sm:$0xf]
    %v409 = vld [vmem:[%s3 + $0xc] sm:$0xf]
    %v410 = vld [vmem:[%s3 + $0x18] sm:$0xf]
    %v411 = vld [vmem:[%s3 + $0x24] sm:$0xf]
    %v412 = vld [vmem:[%s3 + $0x30] sm:$0xf]
    %v413 = vld [vmem:[%s3 + $0x3c] sm:$0xf]
    %v414 = vld [vmem:[%s3 + $0x48] sm:$0xf]
    %v415 = vld [vmem:[%s3 + $0x54] sm:$0xf]
    %v416 = vpack.c.bf16 %v351, %v351
    %v425 = vunpack.c.l.b16 %v408
    %v426 = vunpack.c.l.b16 %v409
    %v427 = vunpack.c.l.b16 %v410
    %v428 = vunpack.c.l.b16 %v411
    %v429 = vunpack.c.l.b16 %v412
    %v430 = vunpack.c.l.b16 %v413
    %v431 = vunpack.c.l.b16 %v414
    %v432 = vunpack.c.l.b16 %v415
    %v433 = vpack.c.b16 %v426, %v425
    %v434 = vpack.c.b16 %v428, %v427
    %v435 = vpack.c.b16 %v430, %v429
    %v436 = vpack.c.b16 %v432, %v431
    %vm441 = vcmask 523264
    %v443 = vsel %vm441, %v416, 0
    %445 = vmatprep.subr.bf16.mxu0 0
    %446 = vmatpush1.bf16.msra.mxu0 %v433
    %447 = vmatprep.subr.bf16.mxu0 0
    %448 = vmatpush1.bf16.msra.mxu0 %v434
    %449 = vmatprep.subr.bf16.mxu0 0
    %450 = vmatpush1.bf16.msra.mxu0 %v435
    %451 = vmatprep.subr.bf16.mxu0 0
    %452 = vmatpush1.bf16.msra.mxu0 %v436
    %453 = vmatprep.subr.bf16.mxu0 0
    %454 = vmatpush1.bf16.msra.mxu0 0
    %455 = vmatprep.subr.bf16.mxu0 0
    %456 = vmatpush1.bf16.msra.mxu0 0
    %457 = vmatprep.subr.bf16.mxu0 0
    %458 = vmatpush1.bf16.msra.mxu0 0
    %459 = vmatprep.subr.bf16.mxu0 0
    %460 = vmatpush1.bf16.msra.mxu0 0
    %461 = vmatprep.subr.bf16.mxu0 0
    %462 = vmatpush1.bf16.msra.mxu0 0
    %463 = vmatprep.subr.bf16.mxu0 0
    %464 = vmatpush1.bf16.msra.mxu0 0
    %465 = vmatprep.subr.bf16.mxu0 0
    %466 = vmatpush1.bf16.msra.mxu0 0
    %467 = vmatprep.subr.bf16.mxu0 0
    %468 = vmatpush1.bf16.msra.mxu0 0
    %469 = vmatprep.subr.bf16.mxu0 0
    %470 = vmatpush1.bf16.msra.mxu0 0
    %471 = vmatprep.subr.bf16.mxu0 0
    %472 = vmatpush1.bf16.msra.mxu0 0
    %473 = vmatprep.subr.bf16.mxu0 0
    %474 = vmatpush1.bf16.msra.mxu0 0
    %475 = vmatprep.subr.bf16.mxu0 0
    %476 = vmatpush1.bf16.msra.mxu0 0
    %477 = vmatprep.mubr.bf16.mxu0 0
    %478 = vmatmul.mubr.bf16.gmra.mrb[0].mxu0 %v443
    %v479 = vpop.f32.mrb[0].mxu0
    %v480 = vadd.f32 0.0, %v479
    %v481 = vpop.f32.mrb[0].mxu0
    %v482 = vpop.f32.mrb[0].mxu0
    %v483 = vpop.f32.mrb[0].mxu0
    %484 = vdwg.mxu0
    %v485 = vadd.f32 %v480, %v405
    %vm486 = vcmp.gt.f32.partialorder %v485, 0.0
    %v487 = vmul.f32 %v485, 0.2
    %v488 = vsel %vm486, %v485, %v487
    %v489 = vld [vmem:[%s3 + $0x4] sm:$0xf]
    %v490 = vld [vmem:[%s3 + $0x10] sm:$0xf]
    %v491 = vld [vmem:[%s3 + $0x1c] sm:$0xf]
    %v492 = vld [vmem:[%s3 + $0x28] sm:$0xf]
    %v493 = vld [vmem:[%s3 + $0x34] sm:$0xf]
    %v494 = vld [vmem:[%s3 + $0x40] sm:$0xf]
    %v495 = vld [vmem:[%s3 + $0x4c] sm:$0xf]
    %v496 = vld [vmem:[%s3 + $0x58] sm:$0xf]
    %v497 = vpack.c.bf16 %v488, %v488
    %v506 = vunpack.c.l.b16 %v489
    %v507 = vunpack.c.l.b16 %v490
    %v508 = vunpack.c.l.b16 %v491
    %v509 = vunpack.c.l.b16 %v492
    %v510 = vunpack.c.l.b16 %v493
    %v511 = vunpack.c.l.b16 %v494
    %v512 = vunpack.c.l.b16 %v495
    %v513 = vunpack.c.l.b16 %v496
    %v514 = vpack.c.b16 %v507, %v506
    %v515 = vpack.c.b16 %v509, %v508
    %v516 = vpack.c.b16 %v511, %v510
    %v517 = vpack.c.b16 %v513, %v512
    %v523 = vsel %vm441, %v497, 0
    %525 = vmatprep.subr.bf16.mxu0 0
    %526 = vmatpush1.bf16.msra.mxu0 %v514
    %527 = vmatprep.subr.bf16.mxu0 0
    %528 = vmatpush1.bf16.msra.mxu0 %v515
    %529 = vmatprep.subr.bf16.mxu0 0
    %530 = vmatpush1.bf16.msra.mxu0 %v516
    %531 = vmatprep.subr.bf16.mxu0 0
    %532 = vmatpush1.bf16.msra.mxu0 %v517
    %533 = vmatprep.subr.bf16.mxu0 0
    %534 = vmatpush1.bf16.msra.mxu0 0
    %535 = vmatprep.subr.bf16.mxu0 0
    %536 = vmatpush1.bf16.msra.mxu0 0
    %537 = vmatprep.subr.bf16.mxu0 0
    %538 = vmatpush1.bf16.msra.mxu0 0
    %539 = vmatprep.subr.bf16.mxu0 0
    %540 = vmatpush1.bf16.msra.mxu0 0
    %541 = vmatprep.subr.bf16.mxu0 0
    %542 = vmatpush1.bf16.msra.mxu0 0
    %543 = vmatprep.subr.bf16.mxu0 0
    %544 = vmatpush1.bf16.msra.mxu0 0
    %545 = vmatprep.subr.bf16.mxu0 0
    %546 = vmatpush1.bf16.msra.mxu0 0
    %547 = vmatprep.subr.bf16.mxu0 0
    %548 = vmatpush1.bf16.msra.mxu0 0
    %549 = vmatprep.subr.bf16.mxu0 0
    %550 = vmatpush1.bf16.msra.mxu0 0
    %551 = vmatprep.subr.bf16.mxu0 0
    %552 = vmatpush1.bf16.msra.mxu0 0
    %553 = vmatprep.subr.bf16.mxu0 0
    %554 = vmatpush1.bf16.msra.mxu0 0
    %555 = vmatprep.subr.bf16.mxu0 0
    %556 = vmatpush1.bf16.msra.mxu0 0
    %557 = vmatprep.mubr.bf16.mxu0 0
    %558 = vmatmul.mubr.bf16.gmra.mrb[0].mxu0 %v523
    %v559 = vpop.f32.mrb[0].mxu0
    %v560 = vadd.f32 %v406, %v559
    %v561 = vpop.f32.mrb[0].mxu0
    %v562 = vpop.f32.mrb[0].mxu0
    %v563 = vpop.f32.mrb[0].mxu0
    %564 = vdwg.mxu0
    %vm565 = vcmp.gt.f32.partialorder %v560, 0.0
    %v566 = vmul.f32 %v560, 0.2
    %v567 = vsel %vm565, %v560, %v566
    %v568 = vld [vmem:[%s3 + $0x8] sm:$0xf]
    %v569 = vld [vmem:[%s3 + $0x14] sm:$0xf]
    %v570 = vld [vmem:[%s3 + $0x20] sm:$0xf]
    %v571 = vld [vmem:[%s3 + $0x2c] sm:$0xf]
    %v572 = vld [vmem:[%s3 + $0x38] sm:$0xf]
    %v573 = vld [vmem:[%s3 + $0x44] sm:$0xf]
    %v574 = vld [vmem:[%s3 + $0x50] sm:$0xf]
    %v575 = vld [vmem:[%s3 + $0x5c] sm:$0xf]
    %v576 = vpack.c.bf16 %v567, %v567
    %v585 = vunpack.c.l.b16 %v568
    %v586 = vunpack.c.l.b16 %v569
    %v587 = vunpack.c.l.b16 %v570
    %v588 = vunpack.c.l.b16 %v571
    %v589 = vunpack.c.l.b16 %v572
    %v590 = vunpack.c.l.b16 %v573
    %v591 = vunpack.c.l.b16 %v574
    %v592 = vunpack.c.l.b16 %v575
    %v593 = vpack.c.b16 %v586, %v585
    %v594 = vpack.c.b16 %v588, %v587
    %v595 = vpack.c.b16 %v590, %v589
    %v596 = vpack.c.b16 %v592, %v591
    %v602 = vsel %vm441, %v576, 0
    %604 = vmatprep.subr.bf16.mxu0 0
    %605 = vmatpush1.bf16.msra.mxu0 %v593
    %606 = vmatprep.subr.bf16.mxu0 0
    %607 = vmatpush1.bf16.msra.mxu0 %v594
    %608 = vmatprep.subr.bf16.mxu0 0
    %609 = vmatpush1.bf16.msra.mxu0 %v595
    %610 = vmatprep.subr.bf16.mxu0 0
    %611 = vmatpush1.bf16.msra.mxu0 %v596
    %612 = vmatprep.subr.bf16.mxu0 0
    %613 = vmatpush1.bf16.msra.mxu0 0
    %614 = vmatprep.subr.bf16.mxu0 0
    %615 = vmatpush1.bf16.msra.mxu0 0
    %616 = vmatprep.subr.bf16.mxu0 0
    %617 = vmatpush1.bf16.msra.mxu0 0
    %618 = vmatprep.subr.bf16.mxu0 0
    %619 = vmatpush1.bf16.msra.mxu0 0
    %620 = vmatprep.subr.bf16.mxu0 0
    %621 = vmatpush1.bf16.msra.mxu0 0
    %622 = vmatprep.subr.bf16.mxu0 0
    %623 = vmatpush1.bf16.msra.mxu0 0
    %624 = vmatprep.subr.bf16.mxu0 0
    %625 = vmatpush1.bf16.msra.mxu0 0
    %626 = vmatprep.subr.bf16.mxu0 0
    %627 = vmatpush1.bf16.msra.mxu0 0
    %628 = vmatprep.subr.bf16.mxu0 0
    %629 = vmatpush1.bf16.msra.mxu0 0
    %630 = vmatprep.subr.bf16.mxu0 0
    %631 = vmatpush1.bf16.msra.mxu0 0
    %632 = vmatprep.subr.bf16.mxu0 0
    %633 = vmatpush1.bf16.msra.mxu0 0
    %634 = vmatprep.subr.bf16.mxu0 0
    %635 = vmatpush1.bf16.msra.mxu0 0
    %636 = vmatprep.mubr.bf16.mxu0 0
    %637 = vmatmul.mubr.bf16.gmra.mrb[0].mxu0 %v602
    %v638 = vpop.f32.mrb[0].mxu0
    %v639 = vadd.f32 %v407, %v638
    %v640 = vpop.f32.mrb[0].mxu0
    %v641 = vpop.f32.mrb[0].mxu0
    %v642 = vpop.f32.mrb[0].mxu0
    %643 = vdwg.mxu0
    %v644 = vld [vmem:[#allocation5] sm:$0xf]
    %v645 = vld [vmem:[#allocation5 + $0xc] sm:$0xf]
    %v646 = vld [vmem:[#allocation5 + $0x18] sm:$0xf]
    %v647 = vld [vmem:[#allocation5 + $0x24] sm:$0xf]
    %v648 = vpack.c.bf16 %v400, %v400
    %v653 = vunpack.c.l.b16 %v644
    %v654 = vunpack.c.l.b16 %v645
    %v655 = vunpack.c.l.b16 %v646
    %v656 = vunpack.c.l.b16 %v647
    %v657 = vpack.c.b16 %v654, %v653
    %v658 = vpack.c.b16 %v656, %v655
    %vm661 = vcmask 261120
    %v663 = vsel %vm661, %v648, 0
    %665 = vmatprep.subr.bf16.mxu0 0
    %666 = vmatpush1.bf16.msra.mxu0 %v657
    %667 = vmatprep.subr.bf16.mxu0 0
    %668 = vmatpush1.bf16.msra.mxu0 %v658
    %669 = vmatprep.subr.bf16.mxu0 0
    %670 = vmatpush1.bf16.msra.mxu0 0
    %671 = vmatprep.subr.bf16.mxu0 0
    %672 = vmatpush1.bf16.msra.mxu0 0
    %673 = vmatprep.subr.bf16.mxu0 0
    %674 = vmatpush1.bf16.msra.mxu0 0
    %675 = vmatprep.subr.bf16.mxu0 0
    %676 = vmatpush1.bf16.msra.mxu0 0
    %677 = vmatprep.subr.bf16.mxu0 0
    %678 = vmatpush1.bf16.msra.mxu0 0
    %679 = vmatprep.subr.bf16.mxu0 0
    %680 = vmatpush1.bf16.msra.mxu0 0
    %681 = vmatprep.subr.bf16.mxu0 0
    %682 = vmatpush1.bf16.msra.mxu0 0
    %683 = vmatprep.subr.bf16.mxu0 0
    %684 = vmatpush1.bf16.msra.mxu0 0
    %685 = vmatprep.subr.bf16.mxu0 0
    %686 = vmatpush1.bf16.msra.mxu0 0
    %687 = vmatprep.subr.bf16.mxu0 0
    %688 = vmatpush1.bf16.msra.mxu0 0
    %689 = vmatprep.subr.bf16.mxu0 0
    %690 = vmatpush1.bf16.msra.mxu0 0
    %691 = vmatprep.subr.bf16.mxu0 0
    %692 = vmatpush1.bf16.msra.mxu0 0
    %693 = vmatprep.subr.bf16.mxu0 0
    %694 = vmatpush1.bf16.msra.mxu0 0
    %695 = vmatprep.subr.bf16.mxu0 0
    %696 = vmatpush1.bf16.msra.mxu0 0
    %697 = vmatprep.mubr.bf16.mxu0 0
    %698 = vmatmul.mubr.bf16.gmra.mrb[0].mxu0 %v663
    %v699 = vpop.f32.mrb[0].mxu0
    %v700 = vadd.f32 0.0, %v699
    %v701 = vpop.f32.mrb[0].mxu0
    %v702 = vpop.f32.mrb[0].mxu0
    %v703 = vpop.f32.mrb[0].mxu0
    %704 = vdwg.mxu0
    %v705 = vmul.f32 %v700, %v700
    %v707 = vrot.slane %v705, 2
    %v709 = vadd.f32 %v705, %v707
    %v710 = vrot.slane %v705, 4
    %v712 = vadd.f32 %v709, %v710
    %v713 = vrsqrt.pop %v712
    %v714 = vmul.f32 %v712, %v713
    %vm715 = vcmp.eq.f32.partialorder %v712, inf
    %v716 = vsel %vm715, %v712, %v714
    %vm717 = vcmp.eq.f32.partialorder %v712, 0.0
    %v718 = vand.u32 %v712, 2147483648
    %v719 = vsel %vm717, %v718, %v716
    %v720 = vadd.f32 %v719, 1.0
    %v721 = vrsqrt.pop %v720
    %v723 = vrot.slane %v721, 6
    %v725 = vrot.slane %v721, 4
    %v727 = vsel %vm105, %v721, %v723
    %v728 = vsel %vm107, %v727, %v725
    %v729 = vmul.f32 %v700, %v728
    %v730 = vld [vmem:[#allocation5 + $0x4] sm:$0xf]
    %v731 = vld [vmem:[#allocation5 + $0x10] sm:$0xf]
    %v732 = vld [vmem:[#allocation5 + $0x1c] sm:$0xf]
    %v733 = vld [vmem:[#allocation5 + $0x28] sm:$0xf]
    %v734 = vpack.c.bf16 %v729, %v729
    %v739 = vunpack.c.l.b16 %v730
    %v740 = vunpack.c.l.b16 %v731
    %v741 = vunpack.c.l.b16 %v732
    %v742 = vunpack.c.l.b16 %v733
    %v743 = vpack.c.b16 %v740, %v739
    %v744 = vpack.c.b16 %v742, %v741
    %v748 = vsel %vm661, %v734, 0
    %750 = vmatprep.subr.bf16.mxu0 0
    %751 = vmatpush1.bf16.msra.mxu0 %v743
    %752 = vmatprep.subr.bf16.mxu0 0
    %753 = vmatpush1.bf16.msra.mxu0 %v744
    %754 = vmatprep.subr.bf16.mxu0 0
    %755 = vmatpush1.bf16.msra.mxu0 0
    %756 = vmatprep.subr.bf16.mxu0 0
    %757 = vmatpush1.bf16.msra.mxu0 0
    %758 = vmatprep.subr.bf16.mxu0 0
    %759 = vmatpush1.bf16.msra.mxu0 0
    %760 = vmatprep.subr.bf16.mxu0 0
    %761 = vmatpush1.bf16.msra.mxu0 0
    %762 = vmatprep.subr.bf16.mxu0 0
    %763 = vmatpush1.bf16.msra.mxu0 0
    %764 = vmatprep.subr.bf16.mxu0 0
    %765 = vmatpush1.bf16.msra.mxu0 0
    %766 = vmatprep.subr.bf16.mxu0 0
    %767 = vmatpush1.bf16.msra.mxu0 0
    %768 = vmatprep.subr.bf16.mxu0 0
    %769 = vmatpush1.bf16.msra.mxu0 0
    %770 = vmatprep.subr.bf16.mxu0 0
    %771 = vmatpush1.bf16.msra.mxu0 0
    %772 = vmatprep.subr.bf16.mxu0 0
    %773 = vmatpush1.bf16.msra.mxu0 0
    %774 = vmatprep.subr.bf16.mxu0 0
    %775 = vmatpush1.bf16.msra.mxu0 0
    %776 = vmatprep.subr.bf16.mxu0 0
    %777 = vmatpush1.bf16.msra.mxu0 0
    %778 = vmatprep.subr.bf16.mxu0 0
    %779 = vmatpush1.bf16.msra.mxu0 0
    %780 = vmatprep.subr.bf16.mxu0 0
    %781 = vmatpush1.bf16.msra.mxu0 0
    %782 = vmatprep.mubr.bf16.mxu0 0
    %783 = vmatmul.mubr.bf16.gmra.mrb[0].mxu0 %v748
    %v784 = vpop.f32.mrb[0].mxu0
    %v785 = vadd.f32 0.0, %v784
    %v786 = vpop.f32.mrb[0].mxu0
    %v787 = vpop.f32.mrb[0].mxu0
    %v788 = vpop.f32.mrb[0].mxu0
    %789 = vdwg.mxu0
    %v790 = vmul.f32 %v785, %v785
    %v792 = vrot.slane %v790, 2
    %v794 = vadd.f32 %v790, %v792
    %v795 = vrot.slane %v790, 4
    %v797 = vadd.f32 %v794, %v795
    %v798 = vrsqrt.pop %v797
    %v799 = vmul.f32 %v797, %v798
    %vm800 = vcmp.eq.f32.partialorder %v797, inf
    %v801 = vsel %vm800, %v797, %v799
    %vm802 = vcmp.eq.f32.partialorder %v797, 0.0
    %v803 = vand.u32 %v797, 2147483648
    %v804 = vsel %vm802, %v803, %v801
    %v805 = vadd.f32 %v804, 1.0
    %v806 = vrsqrt.pop %v805
    %v808 = vrot.slane %v806, 6
    %v810 = vrot.slane %v806, 4
    %v812 = vsel %vm105, %v806, %v808
    %v813 = vsel %vm107, %v812, %v810
    %v814 = vmul.f32 %v785, %v813
    %v815 = vld [vmem:[#allocation5 + $0x8] sm:$0xf]
    %v816 = vld [vmem:[#allocation5 + $0x14] sm:$0xf]
    %v817 = vld [vmem:[#allocation5 + $0x20] sm:$0xf]
    %v818 = vld [vmem:[#allocation5 + $0x2c] sm:$0xf]
    %v819 = vpack.c.bf16 %v814, %v814
    %821 = vrot.lane.b32.xlu0 %v700, 112
    %v822 = vpop.permute.xlu0 %821
    %v824 = vmul.f32 %v700, %v822
    %v826 = vrot.slane %v824, 2
    %v828 = vadd.f32 %v824, %v826
    %v829 = vrot.slane %v824, 4
    %v831 = vadd.f32 %v828, %v829
    %833 = vrot.lane.b32.xlu0 %v480, 112
    %v834 = vpop.permute.xlu0 %833
    %v836 = vmul.f32 %v480, %v834
    %838 = vrot.lane.b32.xlu0 %v831, 32
    %v839 = vpop.permute.xlu0 %838
    %v841 = vadd.f32 %v836, %v839
    %v842 = vld [vmem:[#allocation7] sm:$0xf]
    %v843 = vld [vmem:[#allocation7 + $0x8] sm:$0xf]
    %v844 = vpack.c.bf16 %v841, %v841
    %846 = vrot.lane.b32.xlu0 %v844, 64
    %v847 = vpop.permute.xlu0 %846
    %v850 = vunpack.c.l.b16 %v842
    %v851 = vunpack.c.l.b16 %v843
    %v852 = vpack.c.b16 %v851, %v850
    %vm854 = vcmask 130048
    %v856 = vsel %vm854, %v847, 0
    %858 = vmatprep.subr.bf16.mxu0 0
    %859 = vmatpush1.bf16.msra.mxu0 %v852
    %860 = vmatprep.subr.bf16.mxu0 0
    %861 = vmatpush1.bf16.msra.mxu0 0
    %862 = vmatprep.subr.bf16.mxu0 0
    %863 = vmatpush1.bf16.msra.mxu0 0
    %864 = vmatprep.subr.bf16.mxu0 0
    %865 = vmatpush1.bf16.msra.mxu0 0
    %866 = vmatprep.subr.bf16.mxu0 0
    %867 = vmatpush1.bf16.msra.mxu0 0
    %868 = vmatprep.subr.bf16.mxu0 0
    %869 = vmatpush1.bf16.msra.mxu0 0
    %870 = vmatprep.subr.bf16.mxu0 0
    %871 = vmatpush1.bf16.msra.mxu0 0
    %872 = vmatprep.subr.bf16.mxu0 0
    %873 = vmatpush1.bf16.msra.mxu0 0
    %874 = vmatprep.subr.bf16.mxu0 0
    %875 = vmatpush1.bf16.msra.mxu0 0
    %876 = vmatprep.subr.bf16.mxu0 0
    %877 = vmatpush1.bf16.msra.mxu0 0
    %878 = vmatprep.subr.bf16.mxu0 0
    %879 = vmatpush1.bf16.msra.mxu0 0
    %880 = vmatprep.subr.bf16.mxu0 0
    %881 = vmatpush1.bf16.msra.mxu0 0
    %882 = vmatprep.subr.bf16.mxu0 0
    %883 = vmatpush1.bf16.msra.mxu0 0
    %884 = vmatprep.subr.bf16.mxu0 0
    %885 = vmatpush1.bf16.msra.mxu0 0
    %886 = vmatprep.subr.bf16.mxu0 0
    %887 = vmatpush1.bf16.msra.mxu0 0
    %888 = vmatprep.subr.bf16.mxu0 0
    %889 = vmatpush1.bf16.msra.mxu0 0
    %890 = vmatprep.mubr.bf16.mxu0 0
    %891 = vmatmul.mubr.bf16.gmra.mrb[0].mxu0 %v856
    %v892 = vpop.f32.mrb[0].mxu0
    %v893 = vadd.f32 0.0, %v892
    %v894 = vpop.f32.mrb[0].mxu0
    %v895 = vpop.f32.mrb[0].mxu0
    %v896 = vpop.f32.mrb[0].mxu0
    %897 = vdwg.mxu0
    %v898 = vrot.slane %v480, 6
    %v900 = vrot.slane %v480, 4
    %v902 = vsel %vm105, %v480, %v898
    %v903 = vsel %vm107, %v902, %v900
    %904 = vrot.lane.b32.xlu0 %v700, 16
    %v905 = vpop.permute.xlu0 %904
    %v907 = vmul.f32 %v903, %v905
    %v908 = vld [vmem:[#allocation7 + $0x4] sm:$0xf]
    %v909 = vld [vmem:[#allocation7 + $0xc] sm:$0xf]
    %v910 = vpack.c.bf16 %v907, %v907
    %912 = vrot.lane.b32.xlu0 %v910, 64
    %v913 = vpop.permute.xlu0 %912
    %v916 = vunpack.c.l.b16 %v908
    %v917 = vunpack.c.l.b16 %v909
    %v918 = vpack.c.b16 %v917, %v916
    %v921 = vsel %vm854, %v913, 0
    %923 = vmatprep.subr.bf16.mxu0 0
    %924 = vmatpush1.bf16.msra.mxu0 %v918
    %925 = vmatprep.subr.bf16.mxu0 0
    %926 = vmatpush1.bf16.msra.mxu0 0
    %927 = vmatprep.subr.bf16.mxu0 0
    %928 = vmatpush1.bf16.msra.mxu0 0
    %929 = vmatprep.subr.bf16.mxu0 0
    %930 = vmatpush1.bf16.msra.mxu0 0
    %931 = vmatprep.subr.bf16.mxu0 0
    %932 = vmatpush1.bf16.msra.mxu0 0
    %933 = vmatprep.subr.bf16.mxu0 0
    %934 = vmatpush1.bf16.msra.mxu0 0
    %935 = vmatprep.subr.bf16.mxu0 0
    %936 = vmatpush1.bf16.msra.mxu0 0
    %937 = vmatprep.subr.bf16.mxu0 0
    %938 = vmatpush1.bf16.msra.mxu0 0
    %939 = vmatprep.subr.bf16.mxu0 0
    %940 = vmatpush1.bf16.msra.mxu0 0
    %941 = vmatprep.subr.bf16.mxu0 0
    %942 = vmatpush1.bf16.msra.mxu0 0
    %943 = vmatprep.subr.bf16.mxu0 0
    %944 = vmatpush1.bf16.msra.mxu0 0
    %945 = vmatprep.subr.bf16.mxu0 0
    %946 = vmatpush1.bf16.msra.mxu0 0
    %947 = vmatprep.subr.bf16.mxu0 0
    %948 = vmatpush1.bf16.msra.mxu0 0
    %949 = vmatprep.subr.bf16.mxu0 0
    %950 = vmatpush1.bf16.msra.mxu0 0
    %951 = vmatprep.subr.bf16.mxu0 0
    %952 = vmatpush1.bf16.msra.mxu0 0
    %953 = vmatprep.subr.bf16.mxu0 0
    %954 = vmatpush1.bf16.msra.mxu0 0
    %955 = vmatprep.mubr.bf16.mxu0 0
    %956 = vmatmul.mubr.bf16.gmra.mrb[0].mxu0 %v921
    %v957 = vpop.f32.mrb[0].mxu0
    %v958 = vadd.f32 0.0, %v957
    %v959 = vpop.f32.mrb[0].mxu0
    %v960 = vpop.f32.mrb[0].mxu0
    %v961 = vpop.f32.mrb[0].mxu0
    %962 = vdwg.mxu0
    %v963 = vadd.f32 %v639, %v893
    %v964 = vmul.f32 %v963, 0.5
    %v965 = vadd.f32 %v351, %v964
    %v970 = vunpack.c.l.b16 %v815
    %v971 = vunpack.c.l.b16 %v816
    %v972 = vunpack.c.l.b16 %v817
    %v973 = vunpack.c.l.b16 %v818
    %v974 = vpack.c.b16 %v971, %v970
    %v975 = vpack.c.b16 %v973, %v972
    %v979 = vsel %vm661, %v819, 0
    %981 = vmatprep.subr.bf16.mxu0 0
    %982 = vmatpush1.bf16.msra.mxu0 %v974
    %983 = vmatprep.subr.bf16.mxu0 0
    %984 = vmatpush1.bf16.msra.mxu0 %v975
    %985 = vmatprep.subr.bf16.mxu0 0
    %986 = vmatpush1.bf16.msra.mxu0 0
    %987 = vmatprep.subr.bf16.mxu0 0
    %988 = vmatpush1.bf16.msra.mxu0 0
    %989 = vmatprep.subr.bf16.mxu0 0
    %990 = vmatpush1.bf16.msra.mxu0 0
    %991 = vmatprep.subr.bf16.mxu0 0
    %992 = vmatpush1.bf16.msra.mxu0 0
    %993 = vmatprep.subr.bf16.mxu0 0
    %994 = vmatpush1.bf16.msra.mxu0 0
    %995 = vmatprep.subr.bf16.mxu0 0
    %996 = vmatpush1.bf16.msra.mxu0 0
    %997 = vmatprep.subr.bf16.mxu0 0
    %998 = vmatpush1.bf16.msra.mxu0 0
    %999 = vmatprep.subr.bf16.mxu0 0
    %1000 = vmatpush1.bf16.msra.mxu0 0
    %1001 = vmatprep.subr.bf16.mxu0 0
    %1002 = vmatpush1.bf16.msra.mxu0 0
    %1003 = vmatprep.subr.bf16.mxu0 0
    %1004 = vmatpush1.bf16.msra.mxu0 0
    %1005 = vmatprep.subr.bf16.mxu0 0
    %1006 = vmatpush1.bf16.msra.mxu0 0
    %1007 = vmatprep.subr.bf16.mxu0 0
    %1008 = vmatpush1.bf16.msra.mxu0 0
    %1009 = vmatprep.subr.bf16.mxu0 0
    %1010 = vmatpush1.bf16.msra.mxu0 0
    %1011 = vmatprep.subr.bf16.mxu0 0
    %1012 = vmatpush1.bf16.msra.mxu0 0
    %1013 = vmatprep.mubr.bf16.mxu0 0
    %1014 = vmatmul.mubr.bf16.gmra.mrb[0].mxu0 %v979
    %v1015 = vpop.f32.mrb[0].mxu0
    %v1016 = vadd.f32 %v958, %v1015
    %v1017 = vpop.f32.mrb[0].mxu0
    %v1018 = vpop.f32.mrb[0].mxu0
    %v1019 = vpop.f32.mrb[0].mxu0
    %1020 = vdwg.mxu0
    %v1021 = vmul.f32 %v1016, 0.05
    %v1022 = vadd.f32 %v400, %v1021
    %v1023 = vld [vmem:[#allocation8 + $0x5] ss:$0 sm:$0xff]
    %v1024 = vld [vmem:[#allocation8 + $0x6] ss:$0 sm:$0xff]
    %v1025 = vld [vmem:[#allocation8 + $0x7] ss:$0 sm:$0xff]
    %s1026 = scalar_lea.vmem %s3, 96
    %v1027 = vld [vmem:[%s1026] sm:$0xf]
    %v1028 = vld [vmem:[%s1026 + $0xc] sm:$0xf]
    %v1029 = vld [vmem:[%s1026 + $0x18] sm:$0xf]
    %v1030 = vld [vmem:[%s1026 + $0x24] sm:$0xf]
    %v1031 = vld [vmem:[%s1026 + $0x30] sm:$0xf]
    %v1032 = vld [vmem:[%s1026 + $0x3c] sm:$0xf]
    %v1033 = vld [vmem:[%s1026 + $0x48] sm:$0xf]
    %v1034 = vld [vmem:[%s1026 + $0x54] sm:$0xf]
    %v1035 = vpack.c.bf16 %v965, %v965
    %v1044 = vunpack.c.l.b16 %v1027
    %v1045 = vunpack.c.l.b16 %v1028
    %v1046 = vunpack.c.l.b16 %v1029
    %v1047 = vunpack.c.l.b16 %v1030
    %v1048 = vunpack.c.l.b16 %v1031
    %v1049 = vunpack.c.l.b16 %v1032
    %v1050 = vunpack.c.l.b16 %v1033
    %v1051 = vunpack.c.l.b16 %v1034
    %v1052 = vpack.c.b16 %v1045, %v1044
    %v1053 = vpack.c.b16 %v1047, %v1046
    %v1054 = vpack.c.b16 %v1049, %v1048
    %v1055 = vpack.c.b16 %v1051, %v1050
    %v1061 = vsel %vm441, %v1035, 0
    %1063 = vmatprep.subr.bf16.mxu0 0
    %1064 = vmatpush1.bf16.msra.mxu0 %v1052
    %1065 = vmatprep.subr.bf16.mxu0 0
    %1066 = vmatpush1.bf16.msra.mxu0 %v1053
    %1067 = vmatprep.subr.bf16.mxu0 0
    %1068 = vmatpush1.bf16.msra.mxu0 %v1054
    %1069 = vmatprep.subr.bf16.mxu0 0
    %1070 = vmatpush1.bf16.msra.mxu0 %v1055
    %1071 = vmatprep.subr.bf16.mxu0 0
    %1072 = vmatpush1.bf16.msra.mxu0 0
    %1073 = vmatprep.subr.bf16.mxu0 0
    %1074 = vmatpush1.bf16.msra.mxu0 0
    %1075 = vmatprep.subr.bf16.mxu0 0
    %1076 = vmatpush1.bf16.msra.mxu0 0
    %1077 = vmatprep.subr.bf16.mxu0 0
    %1078 = vmatpush1.bf16.msra.mxu0 0
    %1079 = vmatprep.subr.bf16.mxu0 0
    %1080 = vmatpush1.bf16.msra.mxu0 0
    %1081 = vmatprep.subr.bf16.mxu0 0
    %1082 = vmatpush1.bf16.msra.mxu0 0
    %1083 = vmatprep.subr.bf16.mxu0 0
    %1084 = vmatpush1.bf16.msra.mxu0 0
    %1085 = vmatprep.subr.bf16.mxu0 0
    %1086 = vmatpush1.bf16.msra.mxu0 0
    %1087 = vmatprep.subr.bf16.mxu0 0
    %1088 = vmatpush1.bf16.msra.mxu0 0
    %1089 = vmatprep.subr.bf16.mxu0 0
    %1090 = vmatpush1.bf16.msra.mxu0 0
    %1091 = vmatprep.subr.bf16.mxu0 0
    %1092 = vmatpush1.bf16.msra.mxu0 0
    %1093 = vmatprep.subr.bf16.mxu0 0
    %1094 = vmatpush1.bf16.msra.mxu0 0
    %1095 = vmatprep.mubr.bf16.mxu0 0
    %1096 = vmatmul.mubr.bf16.gmra.mrb[0].mxu0 %v1061
    %v1097 = vpop.f32.mrb[0].mxu0
    %v1098 = vadd.f32 0.0, %v1097
    %v1099 = vpop.f32.mrb[0].mxu0
    %v1100 = vpop.f32.mrb[0].mxu0
    %v1101 = vpop.f32.mrb[0].mxu0
    %1102 = vdwg.mxu0
    %v1103 = vadd.f32 %v1098, %v1023
    %vm1104 = vcmp.gt.f32.partialorder %v1103, 0.0
    %v1105 = vmul.f32 %v1103, 0.2
    %v1106 = vsel %vm1104, %v1103, %v1105
    %v1107 = vld [vmem:[%s1026 + $0x4] sm:$0xf]
    %v1108 = vld [vmem:[%s1026 + $0x10] sm:$0xf]
    %v1109 = vld [vmem:[%s1026 + $0x1c] sm:$0xf]
    %v1110 = vld [vmem:[%s1026 + $0x28] sm:$0xf]
    %v1111 = vld [vmem:[%s1026 + $0x34] sm:$0xf]
    %v1112 = vld [vmem:[%s1026 + $0x40] sm:$0xf]
    %v1113 = vld [vmem:[%s1026 + $0x4c] sm:$0xf]
    %v1114 = vld [vmem:[%s1026 + $0x58] sm:$0xf]
    %v1115 = vpack.c.bf16 %v1106, %v1106
    %v1124 = vunpack.c.l.b16 %v1107
    %v1125 = vunpack.c.l.b16 %v1108
    %v1126 = vunpack.c.l.b16 %v1109
    %v1127 = vunpack.c.l.b16 %v1110
    %v1128 = vunpack.c.l.b16 %v1111
    %v1129 = vunpack.c.l.b16 %v1112
    %v1130 = vunpack.c.l.b16 %v1113
    %v1131 = vunpack.c.l.b16 %v1114
    %v1132 = vpack.c.b16 %v1125, %v1124
    %v1133 = vpack.c.b16 %v1127, %v1126
    %v1134 = vpack.c.b16 %v1129, %v1128
    %v1135 = vpack.c.b16 %v1131, %v1130
    %v1141 = vsel %vm441, %v1115, 0
    %1143 = vmatprep.subr.bf16.mxu0 0
    %1144 = vmatpush1.bf16.msra.mxu0 %v1132
    %1145 = vmatprep.subr.bf16.mxu0 0
    %1146 = vmatpush1.bf16.msra.mxu0 %v1133
    %1147 = vmatprep.subr.bf16.mxu0 0
    %1148 = vmatpush1.bf16.msra.mxu0 %v1134
    %1149 = vmatprep.subr.bf16.mxu0 0
    %1150 = vmatpush1.bf16.msra.mxu0 %v1135
    %1151 = vmatprep.subr.bf16.mxu0 0
    %1152 = vmatpush1.bf16.msra.mxu0 0
    %1153 = vmatprep.subr.bf16.mxu0 0
    %1154 = vmatpush1.bf16.msra.mxu0 0
    %1155 = vmatprep.subr.bf16.mxu0 0
    %1156 = vmatpush1.bf16.msra.mxu0 0
    %1157 = vmatprep.subr.bf16.mxu0 0
    %1158 = vmatpush1.bf16.msra.mxu0 0
    %1159 = vmatprep.subr.bf16.mxu0 0
    %1160 = vmatpush1.bf16.msra.mxu0 0
    %1161 = vmatprep.subr.bf16.mxu0 0
    %1162 = vmatpush1.bf16.msra.mxu0 0
    %1163 = vmatprep.subr.bf16.mxu0 0
    %1164 = vmatpush1.bf16.msra.mxu0 0
    %1165 = vmatprep.subr.bf16.mxu0 0
    %1166 = vmatpush1.bf16.msra.mxu0 0
    %1167 = vmatprep.subr.bf16.mxu0 0
    %1168 = vmatpush1.bf16.msra.mxu0 0
    %1169 = vmatprep.subr.bf16.mxu0 0
    %1170 = vmatpush1.bf16.msra.mxu0 0
    %1171 = vmatprep.subr.bf16.mxu0 0
    %1172 = vmatpush1.bf16.msra.mxu0 0
    %1173 = vmatprep.subr.bf16.mxu0 0
    %1174 = vmatpush1.bf16.msra.mxu0 0
    %1175 = vmatprep.mubr.bf16.mxu0 0
    %1176 = vmatmul.mubr.bf16.gmra.mrb[0].mxu0 %v1141
    %v1177 = vpop.f32.mrb[0].mxu0
    %v1178 = vadd.f32 %v1024, %v1177
    %v1179 = vpop.f32.mrb[0].mxu0
    %v1180 = vpop.f32.mrb[0].mxu0
    %v1181 = vpop.f32.mrb[0].mxu0
    %1182 = vdwg.mxu0
    %vm1183 = vcmp.gt.f32.partialorder %v1178, 0.0
    %v1184 = vmul.f32 %v1178, 0.2
    %v1185 = vsel %vm1183, %v1178, %v1184
    %v1186 = vld [vmem:[%s1026 + $0x8] sm:$0xf]
    %v1187 = vld [vmem:[%s1026 + $0x14] sm:$0xf]
    %v1188 = vld [vmem:[%s1026 + $0x20] sm:$0xf]
    %v1189 = vld [vmem:[%s1026 + $0x2c] sm:$0xf]
    %v1190 = vld [vmem:[%s1026 + $0x38] sm:$0xf]
    %v1191 = vld [vmem:[%s1026 + $0x44] sm:$0xf]
    %v1192 = vld [vmem:[%s1026 + $0x50] sm:$0xf]
    %v1193 = vld [vmem:[%s1026 + $0x5c] sm:$0xf]
    %v1194 = vpack.c.bf16 %v1185, %v1185
    %v1203 = vunpack.c.l.b16 %v1186
    %v1204 = vunpack.c.l.b16 %v1187
    %v1205 = vunpack.c.l.b16 %v1188
    %v1206 = vunpack.c.l.b16 %v1189
    %v1207 = vunpack.c.l.b16 %v1190
    %v1208 = vunpack.c.l.b16 %v1191
    %v1209 = vunpack.c.l.b16 %v1192
    %v1210 = vunpack.c.l.b16 %v1193
    %v1211 = vpack.c.b16 %v1204, %v1203
    %v1212 = vpack.c.b16 %v1206, %v1205
    %v1213 = vpack.c.b16 %v1208, %v1207
    %v1214 = vpack.c.b16 %v1210, %v1209
    %v1220 = vsel %vm441, %v1194, 0
    %1222 = vmatprep.subr.bf16.mxu0 0
    %1223 = vmatpush1.bf16.msra.mxu0 %v1211
    %1224 = vmatprep.subr.bf16.mxu0 0
    %1225 = vmatpush1.bf16.msra.mxu0 %v1212
    %1226 = vmatprep.subr.bf16.mxu0 0
    %1227 = vmatpush1.bf16.msra.mxu0 %v1213
    %1228 = vmatprep.subr.bf16.mxu0 0
    %1229 = vmatpush1.bf16.msra.mxu0 %v1214
    %1230 = vmatprep.subr.bf16.mxu0 0
    %1231 = vmatpush1.bf16.msra.mxu0 0
    %1232 = vmatprep.subr.bf16.mxu0 0
    %1233 = vmatpush1.bf16.msra.mxu0 0
    %1234 = vmatprep.subr.bf16.mxu0 0
    %1235 = vmatpush1.bf16.msra.mxu0 0
    %1236 = vmatprep.subr.bf16.mxu0 0
    %1237 = vmatpush1.bf16.msra.mxu0 0
    %1238 = vmatprep.subr.bf16.mxu0 0
    %1239 = vmatpush1.bf16.msra.mxu0 0
    %1240 = vmatprep.subr.bf16.mxu0 0
    %1241 = vmatpush1.bf16.msra.mxu0 0
    %1242 = vmatprep.subr.bf16.mxu0 0
    %1243 = vmatpush1.bf16.msra.mxu0 0
    %1244 = vmatprep.subr.bf16.mxu0 0
    %1245 = vmatpush1.bf16.msra.mxu0 0
    %1246 = vmatprep.subr.bf16.mxu0 0
    %1247 = vmatpush1.bf16.msra.mxu0 0
    %1248 = vmatprep.subr.bf16.mxu0 0
    %1249 = vmatpush1.bf16.msra.mxu0 0
    %1250 = vmatprep.subr.bf16.mxu0 0
    %1251 = vmatpush1.bf16.msra.mxu0 0
    %1252 = vmatprep.subr.bf16.mxu0 0
    %1253 = vmatpush1.bf16.msra.mxu0 0
    %1254 = vmatprep.mubr.bf16.mxu0 0
    %1255 = vmatmul.mubr.bf16.gmra.mrb[0].mxu0 %v1220
    %v1256 = vpop.f32.mrb[0].mxu0
    %v1257 = vadd.f32 %v1025, %v1256
    %v1258 = vpop.f32.mrb[0].mxu0
    %v1259 = vpop.f32.mrb[0].mxu0
    %v1260 = vpop.f32.mrb[0].mxu0
    %1261 = vdwg.mxu0
    %s1262 = scalar_lea.vmem [#allocation5], 48
    %v1263 = vld [vmem:[%s1262] sm:$0xf]
    %v1264 = vld [vmem:[%s1262 + $0xc] sm:$0xf]
    %v1265 = vld [vmem:[%s1262 + $0x18] sm:$0xf]
    %v1266 = vld [vmem:[%s1262 + $0x24] sm:$0xf]
    %v1267 = vpack.c.bf16 %v1022, %v1022
    %v1272 = vunpack.c.l.b16 %v1263
    %v1273 = vunpack.c.l.b16 %v1264
    %v1274 = vunpack.c.l.b16 %v1265
    %v1275 = vunpack.c.l.b16 %v1266
    %v1276 = vpack.c.b16 %v1273, %v1272
    %v1277 = vpack.c.b16 %v1275, %v1274
    %v1281 = vsel %vm661, %v1267, 0
    %1283 = vmatprep.subr.bf16.mxu0 0
    %1284 = vmatpush1.bf16.msra.mxu0 %v1276
    %1285 = vmatprep.subr.bf16.mxu0 0
    %1286 = vmatpush1.bf16.msra.mxu0 %v1277
    %1287 = vmatprep.subr.bf16.mxu0 0
    %1288 = vmatpush1.bf16.msra.mxu0 0
    %1289 = vmatprep.subr.bf16.mxu0 0
    %1290 = vmatpush1.bf16.msra.mxu0 0
    %1291 = vmatprep.subr.bf16.mxu0 0
    %1292 = vmatpush1.bf16.msra.mxu0 0
    %1293 = vmatprep.subr.bf16.mxu0 0
    %1294 = vmatpush1.bf16.msra.mxu0 0
    %1295 = vmatprep.subr.bf16.mxu0 0
    %1296 = vmatpush1.bf16.msra.mxu0 0
    %1297 = vmatprep.subr.bf16.mxu0 0
    %1298 = vmatpush1.bf16.msra.mxu0 0
    %1299 = vmatprep.subr.bf16.mxu0 0
    %1300 = vmatpush1.bf16.msra.mxu0 0
    %1301 = vmatprep.subr.bf16.mxu0 0
    %1302 = vmatpush1.bf16.msra.mxu0 0
    %1303 = vmatprep.subr.bf16.mxu0 0
    %1304 = vmatpush1.bf16.msra.mxu0 0
    %1305 = vmatprep.subr.bf16.mxu0 0
    %1306 = vmatpush1.bf16.msra.mxu0 0
    %1307 = vmatprep.subr.bf16.mxu0 0
    %1308 = vmatpush1.bf16.msra.mxu0 0
    %1309 = vmatprep.subr.bf16.mxu0 0
    %1310 = vmatpush1.bf16.msra.mxu0 0
    %1311 = vmatprep.subr.bf16.mxu0 0
    %1312 = vmatpush1.bf16.msra.mxu0 0
    %1313 = vmatprep.subr.bf16.mxu0 0
    %1314 = vmatpush1.bf16.msra.mxu0 0
    %1315 = vmatprep.mubr.bf16.mxu0 0
    %1316 = vmatmul.mubr.bf16.gmra.mrb[0].mxu0 %v1281
    %v1317 = vpop.f32.mrb[0].mxu0
    %v1318 = vadd.f32 0.0, %v1317
    %v1319 = vpop.f32.mrb[0].mxu0
    %v1320 = vpop.f32.mrb[0].mxu0
    %v1321 = vpop.f32.mrb[0].mxu0
    %1322 = vdwg.mxu0
    %v1323 = vmul.f32 %v1318, %v1318
    %v1325 = vrot.slane %v1323, 2
    %v1327 = vadd.f32 %v1323, %v1325
    %v1328 = vrot.slane %v1323, 4
    %v1330 = vadd.f32 %v1327, %v1328
    %v1331 = vrsqrt.pop %v1330
    %v1332 = vmul.f32 %v1330, %v1331
    %vm1333 = vcmp.eq.f32.partialorder %v1330, inf
    %v1334 = vsel %vm1333, %v1330, %v1332
    %vm1335 = vcmp.eq.f32.partialorder %v1330, 0.0
    %v1336 = vand.u32 %v1330, 2147483648
    %v1337 = vsel %vm1335, %v1336, %v1334
    %v1338 = vadd.f32 %v1337, 1.0
    %v1339 = vrsqrt.pop %v1338
    %v1341 = vrot.slane %v1339, 6
    %v1343 = vrot.slane %v1339, 4
    %v1345 = vsel %vm105, %v1339, %v1341
    %v1346 = vsel %vm107, %v1345, %v1343
    %v1347 = vmul.f32 %v1318, %v1346
    %v1348 = vld [vmem:[%s1262 + $0x4] sm:$0xf]
    %v1349 = vld [vmem:[%s1262 + $0x10] sm:$0xf]
    %v1350 = vld [vmem:[%s1262 + $0x1c] sm:$0xf]
    %v1351 = vld [vmem:[%s1262 + $0x28] sm:$0xf]
    %v1352 = vpack.c.bf16 %v1347, %v1347
    %v1357 = vunpack.c.l.b16 %v1348
    %v1358 = vunpack.c.l.b16 %v1349
    %v1359 = vunpack.c.l.b16 %v1350
    %v1360 = vunpack.c.l.b16 %v1351
    %v1361 = vpack.c.b16 %v1358, %v1357
    %v1362 = vpack.c.b16 %v1360, %v1359
    %v1366 = vsel %vm661, %v1352, 0
    %1368 = vmatprep.subr.bf16.mxu0 0
    %1369 = vmatpush1.bf16.msra.mxu0 %v1361
    %1370 = vmatprep.subr.bf16.mxu0 0
    %1371 = vmatpush1.bf16.msra.mxu0 %v1362
    %1372 = vmatprep.subr.bf16.mxu0 0
    %1373 = vmatpush1.bf16.msra.mxu0 0
    %1374 = vmatprep.subr.bf16.mxu0 0
    %1375 = vmatpush1.bf16.msra.mxu0 0
    %1376 = vmatprep.subr.bf16.mxu0 0
    %1377 = vmatpush1.bf16.msra.mxu0 0
    %1378 = vmatprep.subr.bf16.mxu0 0
    %1379 = vmatpush1.bf16.msra.mxu0 0
    %1380 = vmatprep.subr.bf16.mxu0 0
    %1381 = vmatpush1.bf16.msra.mxu0 0
    %1382 = vmatprep.subr.bf16.mxu0 0
    %1383 = vmatpush1.bf16.msra.mxu0 0
    %1384 = vmatprep.subr.bf16.mxu0 0
    %1385 = vmatpush1.bf16.msra.mxu0 0
    %1386 = vmatprep.subr.bf16.mxu0 0
    %1387 = vmatpush1.bf16.msra.mxu0 0
    %1388 = vmatprep.subr.bf16.mxu0 0
    %1389 = vmatpush1.bf16.msra.mxu0 0
    %1390 = vmatprep.subr.bf16.mxu0 0
    %1391 = vmatpush1.bf16.msra.mxu0 0
    %1392 = vmatprep.subr.bf16.mxu0 0
    %1393 = vmatpush1.bf16.msra.mxu0 0
    %1394 = vmatprep.subr.bf16.mxu0 0
    %1395 = vmatpush1.bf16.msra.mxu0 0
    %1396 = vmatprep.subr.bf16.mxu0 0
    %1397 = vmatpush1.bf16.msra.mxu0 0
    %1398 = vmatprep.subr.bf16.mxu0 0
    %1399 = vmatpush1.bf16.msra.mxu0 0
    %1400 = vmatprep.mubr.bf16.mxu0 0
    %1401 = vmatmul.mubr.bf16.gmra.mrb[0].mxu0 %v1366
    %v1402 = vpop.f32.mrb[0].mxu0
    %v1403 = vadd.f32 0.0, %v1402
    %v1404 = vpop.f32.mrb[0].mxu0
    %v1405 = vpop.f32.mrb[0].mxu0
    %v1406 = vpop.f32.mrb[0].mxu0
    %1407 = vdwg.mxu0
    %v1408 = vmul.f32 %v1403, %v1403
    %v1410 = vrot.slane %v1408, 2
    %v1412 = vadd.f32 %v1408, %v1410
    %v1413 = vrot.slane %v1408, 4
    %v1415 = vadd.f32 %v1412, %v1413
    %v1416 = vrsqrt.pop %v1415
    %v1417 = vmul.f32 %v1415, %v1416
    %vm1418 = vcmp.eq.f32.partialorder %v1415, inf
    %v1419 = vsel %vm1418, %v1415, %v1417
    %vm1420 = vcmp.eq.f32.partialorder %v1415, 0.0
    %v1421 = vand.u32 %v1415, 2147483648
    %v1422 = vsel %vm1420, %v1421, %v1419
    %v1423 = vadd.f32 %v1422, 1.0
    %v1424 = vrsqrt.pop %v1423
    %v1426 = vrot.slane %v1424, 6
    %v1428 = vrot.slane %v1424, 4
    %v1430 = vsel %vm105, %v1424, %v1426
    %v1431 = vsel %vm107, %v1430, %v1428
    %v1432 = vmul.f32 %v1403, %v1431
    %v1433 = vld [vmem:[%s1262 + $0x8] sm:$0xf]
    %v1434 = vld [vmem:[%s1262 + $0x14] sm:$0xf]
    %v1435 = vld [vmem:[%s1262 + $0x20] sm:$0xf]
    %v1436 = vld [vmem:[%s1262 + $0x2c] sm:$0xf]
    %v1437 = vpack.c.bf16 %v1432, %v1432
    %1439 = vrot.lane.b32.xlu0 %v1318, 112
    %v1440 = vpop.permute.xlu0 %1439
    %v1442 = vmul.f32 %v1318, %v1440
    %v1444 = vrot.slane %v1442, 2
    %v1446 = vadd.f32 %v1442, %v1444
    %v1447 = vrot.slane %v1442, 4
    %v1449 = vadd.f32 %v1446, %v1447
    %1451 = vrot.lane.b32.xlu0 %v1098, 112
    %v1452 = vpop.permute.xlu0 %1451
    %v1454 = vmul.f32 %v1098, %v1452
    %1456 = vrot.lane.b32.xlu0 %v1449, 32
    %v1457 = vpop.permute.xlu0 %1456
    %v1459 = vadd.f32 %v1454, %v1457
    %s1460 = scalar_lea.vmem [#allocation7], 16
    %v1461 = vld [vmem:[%s1460] sm:$0xf]
    %v1462 = vld [vmem:[%s1460 + $0x8] sm:$0xf]
    %v1463 = vpack.c.bf16 %v1459, %v1459
    %1465 = vrot.lane.b32.xlu0 %v1463, 64
    %v1466 = vpop.permute.xlu0 %1465
    %v1469 = vunpack.c.l.b16 %v1461
    %v1470 = vunpack.c.l.b16 %v1462
    %v1471 = vpack.c.b16 %v1470, %v1469
    %v1474 = vsel %vm854, %v1466, 0
    %1476 = vmatprep.subr.bf16.mxu0 0
    %1477 = vmatpush1.bf16.msra.mxu0 %v1471
    %1478 = vmatprep.subr.bf16.mxu0 0
    %1479 = vmatpush1.bf16.msra.mxu0 0
    %1480 = vmatprep.subr.bf16.mxu0 0
    %1481 = vmatpush1.bf16.msra.mxu0 0
    %1482 = vmatprep.subr.bf16.mxu0 0
    %1483 = vmatpush1.bf16.msra.mxu0 0
    %1484 = vmatprep.subr.bf16.mxu0 0
    %1485 = vmatpush1.bf16.msra.mxu0 0
    %1486 = vmatprep.subr.bf16.mxu0 0
    %1487 = vmatpush1.bf16.msra.mxu0 0
    %1488 = vmatprep.subr.bf16.mxu0 0
    %1489 = vmatpush1.bf16.msra.mxu0 0
    %1490 = vmatprep.subr.bf16.mxu0 0
    %1491 = vmatpush1.bf16.msra.mxu0 0
    %1492 = vmatprep.subr.bf16.mxu0 0
    %1493 = vmatpush1.bf16.msra.mxu0 0
    %1494 = vmatprep.subr.bf16.mxu0 0
    %1495 = vmatpush1.bf16.msra.mxu0 0
    %1496 = vmatprep.subr.bf16.mxu0 0
    %1497 = vmatpush1.bf16.msra.mxu0 0
    %1498 = vmatprep.subr.bf16.mxu0 0
    %1499 = vmatpush1.bf16.msra.mxu0 0
    %1500 = vmatprep.subr.bf16.mxu0 0
    %1501 = vmatpush1.bf16.msra.mxu0 0
    %1502 = vmatprep.subr.bf16.mxu0 0
    %1503 = vmatpush1.bf16.msra.mxu0 0
    %1504 = vmatprep.subr.bf16.mxu0 0
    %1505 = vmatpush1.bf16.msra.mxu0 0
    %1506 = vmatprep.subr.bf16.mxu0 0
    %1507 = vmatpush1.bf16.msra.mxu0 0
    %1508 = vmatprep.mubr.bf16.mxu0 0
    %1509 = vmatmul.mubr.bf16.gmra.mrb[0].mxu0 %v1474
    %v1510 = vpop.f32.mrb[0].mxu0
    %v1511 = vadd.f32 0.0, %v1510
    %v1512 = vpop.f32.mrb[0].mxu0
    %v1513 = vpop.f32.mrb[0].mxu0
    %v1514 = vpop.f32.mrb[0].mxu0
    %1515 = vdwg.mxu0
    %v1516 = vrot.slane %v1098, 6
    %v1518 = vrot.slane %v1098, 4
    %v1520 = vsel %vm105, %v1098, %v1516
    %v1521 = vsel %vm107, %v1520, %v1518
    %1522 = vrot.lane.b32.xlu0 %v1318, 16
    %v1523 = vpop.permute.xlu0 %1522
    %v1525 = vmul.f32 %v1521, %v1523
    %v1526 = vld [vmem:[%s1460 + $0x4] sm:$0xf]
    %v1527 = vld [vmem:[%s1460 + $0xc] sm:$0xf]
    %v1528 = vpack.c.bf16 %v1525, %v1525
    %1530 = vrot.lane.b32.xlu0 %v1528, 64
    %v1531 = vpop.permute.xlu0 %1530
    %v1534 = vunpack.c.l.b16 %v1526
    %v1535 = vunpack.c.l.b16 %v1527
    %v1536 = vpack.c.b16 %v1535, %v1534
    %v1539 = vsel %vm854, %v1531, 0
    %1541 = vmatprep.subr.bf16.mxu0 0
    %1542 = vmatpush1.bf16.msra.mxu0 %v1536
    %1543 = vmatprep.subr.bf16.mxu0 0
    %1544 = vmatpush1.bf16.msra.mxu0 0
    %1545 = vmatprep.subr.bf16.mxu0 0
    %1546 = vmatpush1.bf16.msra.mxu0 0
    %1547 = vmatprep.subr.bf16.mxu0 0
    %1548 = vmatpush1.bf16.msra.mxu0 0
    %1549 = vmatprep.subr.bf16.mxu0 0
    %1550 = vmatpush1.bf16.msra.mxu0 0
    %1551 = vmatprep.subr.bf16.mxu0 0
    %1552 = vmatpush1.bf16.msra.mxu0 0
    %1553 = vmatprep.subr.bf16.mxu0 0
    %1554 = vmatpush1.bf16.msra.mxu0 0
    %1555 = vmatprep.subr.bf16.mxu0 0
    %1556 = vmatpush1.bf16.msra.mxu0 0
    %1557 = vmatprep.subr.bf16.mxu0 0
    %1558 = vmatpush1.bf16.msra.mxu0 0
    %1559 = vmatprep.subr.bf16.mxu0 0
    %1560 = vmatpush1.bf16.msra.mxu0 0
    %1561 = vmatprep.subr.bf16.mxu0 0
    %1562 = vmatpush1.bf16.msra.mxu0 0
    %1563 = vmatprep.subr.bf16.mxu0 0
    %1564 = vmatpush1.bf16.msra.mxu0 0
    %1565 = vmatprep.subr.bf16.mxu0 0
    %1566 = vmatpush1.bf16.msra.mxu0 0
    %1567 = vmatprep.subr.bf16.mxu0 0
    %1568 = vmatpush1.bf16.msra.mxu0 0
    %1569 = vmatprep.subr.bf16.mxu0 0
    %1570 = vmatpush1.bf16.msra.mxu0 0
    %1571 = vmatprep.subr.bf16.mxu0 0
    %1572 = vmatpush1.bf16.msra.mxu0 0
    %1573 = vmatprep.mubr.bf16.mxu0 0
    %1574 = vmatmul.mubr.bf16.gmra.mrb[0].mxu0 %v1539
    %v1575 = vpop.f32.mrb[0].mxu0
    %v1576 = vadd.f32 0.0, %v1575
    %v1577 = vpop.f32.mrb[0].mxu0
    %v1578 = vpop.f32.mrb[0].mxu0
    %v1579 = vpop.f32.mrb[0].mxu0
    %1580 = vdwg.mxu0
    %v1581 = vadd.f32 %v1257, %v1511
    %v1582 = vmul.f32 %v1581, 0.5
    %v1583 = vadd.f32 %v965, %v1582
    %v1588 = vunpack.c.l.b16 %v1433
    %v1589 = vunpack.c.l.b16 %v1434
    %v1590 = vunpack.c.l.b16 %v1435
    %v1591 = vunpack.c.l.b16 %v1436
    %v1592 = vpack.c.b16 %v1589, %v1588
    %v1593 = vpack.c.b16 %v1591, %v1590
    %v1597 = vsel %vm661, %v1437, 0
    %1599 = vmatprep.subr.bf16.mxu0 0
    %1600 = vmatpush1.bf16.msra.mxu0 %v1592
    %1601 = vmatprep.subr.bf16.mxu0 0
    %1602 = vmatpush1.bf16.msra.mxu0 %v1593
    %1603 = vmatprep.subr.bf16.mxu0 0
    %1604 = vmatpush1.bf16.msra.mxu0 0
    %1605 = vmatprep.subr.bf16.mxu0 0
    %1606 = vmatpush1.bf16.msra.mxu0 0
    %1607 = vmatprep.subr.bf16.mxu0 0
    %1608 = vmatpush1.bf16.msra.mxu0 0
    %1609 = vmatprep.subr.bf16.mxu0 0
    %1610 = vmatpush1.bf16.msra.mxu0 0
    %1611 = vmatprep.subr.bf16.mxu0 0
    %1612 = vmatpush1.bf16.msra.mxu0 0
    %1613 = vmatprep.subr.bf16.mxu0 0
    %1614 = vmatpush1.bf16.msra.mxu0 0
    %1615 = vmatprep.subr.bf16.mxu0 0
    %1616 = vmatpush1.bf16.msra.mxu0 0
    %1617 = vmatprep.subr.bf16.mxu0 0
    %1618 = vmatpush1.bf16.msra.mxu0 0
    %1619 = vmatprep.subr.bf16.mxu0 0
    %1620 = vmatpush1.bf16.msra.mxu0 0
    %1621 = vmatprep.subr.bf16.mxu0 0
    %1622 = vmatpush1.bf16.msra.mxu0 0
    %1623 = vmatprep.subr.bf16.mxu0 0
    %1624 = vmatpush1.bf16.msra.mxu0 0
    %1625 = vmatprep.subr.bf16.mxu0 0
    %1626 = vmatpush1.bf16.msra.mxu0 0
    %1627 = vmatprep.subr.bf16.mxu0 0
    %1628 = vmatpush1.bf16.msra.mxu0 0
    %1629 = vmatprep.subr.bf16.mxu0 0
    %1630 = vmatpush1.bf16.msra.mxu0 0
    %1631 = vmatprep.mubr.bf16.mxu0 0
    %1632 = vmatmul.mubr.bf16.gmra.mrb[0].mxu0 %v1597
    %v1633 = vpop.f32.mrb[0].mxu0
    %v1634 = vadd.f32 %v1576, %v1633
    %v1635 = vpop.f32.mrb[0].mxu0
    %v1636 = vpop.f32.mrb[0].mxu0
    %v1637 = vpop.f32.mrb[0].mxu0
    %1638 = vdwg.mxu0
    %v1639 = vmul.f32 %v1634, 0.05
    %v1640 = vadd.f32 %v1022, %v1639
    %v1641 = vld [vmem:[#allocation8 + $0x10] ss:$0 sm:$0xff]
    %v1642 = vld [vmem:[#allocation8 + $0x11] ss:$0 sm:$0xff]
    %v1643 = vld [vmem:[#allocation8 + $0x12] ss:$0 sm:$0xff]
    %s1644 = scalar_lea.vmem %s3, 192
    %v1645 = vld [vmem:[%s1644] sm:$0xf]
    %v1646 = vld [vmem:[%s1644 + $0xc] sm:$0xf]
    %v1647 = vld [vmem:[%s1644 + $0x18] sm:$0xf]
    %v1648 = vld [vmem:[%s1644 + $0x24] sm:$0xf]
    %v1649 = vld [vmem:[%s1644 + $0x30] sm:$0xf]
    %v1650 = vld [vmem:[%s1644 + $0x3c] sm:$0xf]
    %v1651 = vld [vmem:[%s1644 + $0x48] sm:$0xf]
    %v1652 = vld [vmem:[%s1644 + $0x54] sm:$0xf]
    %v1653 = vpack.c.bf16 %v1583, %v1583
    %v1662 = vunpack.c.l.b16 %v1645
    %v1663 = vunpack.c.l.b16 %v1646
    %v1664 = vunpack.c.l.b16 %v1647
    %v1665 = vunpack.c.l.b16 %v1648
    %v1666 = vunpack.c.l.b16 %v1649
    %v1667 = vunpack.c.l.b16 %v1650
    %v1668 = vunpack.c.l.b16 %v1651
    %v1669 = vunpack.c.l.b16 %v1652
    %v1670 = vpack.c.b16 %v1663, %v1662
    %v1671 = vpack.c.b16 %v1665, %v1664
    %v1672 = vpack.c.b16 %v1667, %v1666
    %v1673 = vpack.c.b16 %v1669, %v1668
    %v1679 = vsel %vm441, %v1653, 0
    %1681 = vmatprep.subr.bf16.mxu0 0
    %1682 = vmatpush1.bf16.msra.mxu0 %v1670
    %1683 = vmatprep.subr.bf16.mxu0 0
    %1684 = vmatpush1.bf16.msra.mxu0 %v1671
    %1685 = vmatprep.subr.bf16.mxu0 0
    %1686 = vmatpush1.bf16.msra.mxu0 %v1672
    %1687 = vmatprep.subr.bf16.mxu0 0
    %1688 = vmatpush1.bf16.msra.mxu0 %v1673
    %1689 = vmatprep.subr.bf16.mxu0 0
    %1690 = vmatpush1.bf16.msra.mxu0 0
    %1691 = vmatprep.subr.bf16.mxu0 0
    %1692 = vmatpush1.bf16.msra.mxu0 0
    %1693 = vmatprep.subr.bf16.mxu0 0
    %1694 = vmatpush1.bf16.msra.mxu0 0
    %1695 = vmatprep.subr.bf16.mxu0 0
    %1696 = vmatpush1.bf16.msra.mxu0 0
    %1697 = vmatprep.subr.bf16.mxu0 0
    %1698 = vmatpush1.bf16.msra.mxu0 0
    %1699 = vmatprep.subr.bf16.mxu0 0
    %1700 = vmatpush1.bf16.msra.mxu0 0
    %1701 = vmatprep.subr.bf16.mxu0 0
    %1702 = vmatpush1.bf16.msra.mxu0 0
    %1703 = vmatprep.subr.bf16.mxu0 0
    %1704 = vmatpush1.bf16.msra.mxu0 0
    %1705 = vmatprep.subr.bf16.mxu0 0
    %1706 = vmatpush1.bf16.msra.mxu0 0
    %1707 = vmatprep.subr.bf16.mxu0 0
    %1708 = vmatpush1.bf16.msra.mxu0 0
    %1709 = vmatprep.subr.bf16.mxu0 0
    %1710 = vmatpush1.bf16.msra.mxu0 0
    %1711 = vmatprep.subr.bf16.mxu0 0
    %1712 = vmatpush1.bf16.msra.mxu0 0
    %1713 = vmatprep.mubr.bf16.mxu0 0
    %1714 = vmatmul.mubr.bf16.gmra.mrb[0].mxu0 %v1679
    %v1715 = vpop.f32.mrb[0].mxu0
    %v1716 = vadd.f32 0.0, %v1715
    %v1717 = vpop.f32.mrb[0].mxu0
    %v1718 = vpop.f32.mrb[0].mxu0
    %v1719 = vpop.f32.mrb[0].mxu0
    %1720 = vdwg.mxu0
    %v1721 = vadd.f32 %v1716, %v1641
    %vm1722 = vcmp.gt.f32.partialorder %v1721, 0.0
    %v1723 = vmul.f32 %v1721, 0.2
    %v1724 = vsel %vm1722, %v1721, %v1723
    %v1725 = vld [vmem:[%s1644 + $0x4] sm:$0xf]
    %v1726 = vld [vmem:[%s1644 + $0x10] sm:$0xf]
    %v1727 = vld [vmem:[%s1644 + $0x1c] sm:$0xf]
    %v1728 = vld [vmem:[%s1644 + $0x28] sm:$0xf]
    %v1729 = vld [vmem:[%s1644 + $0x34] sm:$0xf]
    %v1730 = vld [vmem:[%s1644 + $0x40] sm:$0xf]
    %v1731 = vld [vmem:[%s1644 + $0x4c] sm:$0xf]
    %v1732 = vld [vmem:[%s1644 + $0x58] sm:$0xf]
    %v1733 = vpack.c.bf16 %v1724, %v1724
    %v1742 = vunpack.c.l.b16 %v1725
    %v1743 = vunpack.c.l.b16 %v1726
    %v1744 = vunpack.c.l.b16 %v1727
    %v1745 = vunpack.c.l.b16 %v1728
    %v1746 = vunpack.c.l.b16 %v1729
    %v1747 = vunpack.c.l.b16 %v1730
    %v1748 = vunpack.c.l.b16 %v1731
    %v1749 = vunpack.c.l.b16 %v1732
    %v1750 = vpack.c.b16 %v1743, %v1742
    %v1751 = vpack.c.b16 %v1745, %v1744
    %v1752 = vpack.c.b16 %v1747, %v1746
    %v1753 = vpack.c.b16 %v1749, %v1748
    %v1759 = vsel %vm441, %v1733, 0
    %1761 = vmatprep.subr.bf16.mxu0 0
    %1762 = vmatpush1.bf16.msra.mxu0 %v1750
    %1763 = vmatprep.subr.bf16.mxu0 0
    %1764 = vmatpush1.bf16.msra.mxu0 %v1751
    %1765 = vmatprep.subr.bf16.mxu0 0
    %1766 = vmatpush1.bf16.msra.mxu0 %v1752
    %1767 = vmatprep.subr.bf16.mxu0 0
    %1768 = vmatpush1.bf16.msra.mxu0 %v1753
    %1769 = vmatprep.subr.bf16.mxu0 0
    %1770 = vmatpush1.bf16.msra.mxu0 0
    %1771 = vmatprep.subr.bf16.mxu0 0
    %1772 = vmatpush1.bf16.msra.mxu0 0
    %1773 = vmatprep.subr.bf16.mxu0 0
    %1774 = vmatpush1.bf16.msra.mxu0 0
    %1775 = vmatprep.subr.bf16.mxu0 0
    %1776 = vmatpush1.bf16.msra.mxu0 0
    %1777 = vmatprep.subr.bf16.mxu0 0
    %1778 = vmatpush1.bf16.msra.mxu0 0
    %1779 = vmatprep.subr.bf16.mxu0 0
    %1780 = vmatpush1.bf16.msra.mxu0 0
    %1781 = vmatprep.subr.bf16.mxu0 0
    %1782 = vmatpush1.bf16.msra.mxu0 0
    %1783 = vmatprep.subr.bf16.mxu0 0
    %1784 = vmatpush1.bf16.msra.mxu0 0
    %1785 = vmatprep.subr.bf16.mxu0 0
    %1786 = vmatpush1.bf16.msra.mxu0 0
    %1787 = vmatprep.subr.bf16.mxu0 0
    %1788 = vmatpush1.bf16.msra.mxu0 0
    %1789 = vmatprep.subr.bf16.mxu0 0
    %1790 = vmatpush1.bf16.msra.mxu0 0
    %1791 = vmatprep.subr.bf16.mxu0 0
    %1792 = vmatpush1.bf16.msra.mxu0 0
    %1793 = vmatprep.mubr.bf16.mxu0 0
    %1794 = vmatmul.mubr.bf16.gmra.mrb[0].mxu0 %v1759
    %v1795 = vpop.f32.mrb[0].mxu0
    %v1796 = vadd.f32 %v1642, %v1795
    %v1797 = vpop.f32.mrb[0].mxu0
    %v1798 = vpop.f32.mrb[0].mxu0
    %v1799 = vpop.f32.mrb[0].mxu0
    %1800 = vdwg.mxu0
    %vm1801 = vcmp.gt.f32.partialorder %v1796, 0.0
    %v1802 = vmul.f32 %v1796, 0.2
    %v1803 = vsel %vm1801, %v1796, %v1802
    %v1804 = vld [vmem:[%s1644 + $0x8] sm:$0xf]
    %v1805 = vld [vmem:[%s1644 + $0x14] sm:$0xf]
    %v1806 = vld [vmem:[%s1644 + $0x20] sm:$0xf]
    %v1807 = vld [vmem:[%s1644 + $0x2c] sm:$0xf]
    %v1808 = vld [vmem:[%s1644 + $0x38] sm:$0xf]
    %v1809 = vld [vmem:[%s1644 + $0x44] sm:$0xf]
    %v1810 = vld [vmem:[%s1644 + $0x50] sm:$0xf]
    %v1811 = vld [vmem:[%s1644 + $0x5c] sm:$0xf]
    %v1812 = vpack.c.bf16 %v1803, %v1803
    %v1821 = vunpack.c.l.b16 %v1804
    %v1822 = vunpack.c.l.b16 %v1805
    %v1823 = vunpack.c.l.b16 %v1806
    %v1824 = vunpack.c.l.b16 %v1807
    %v1825 = vunpack.c.l.b16 %v1808
    %v1826 = vunpack.c.l.b16 %v1809
    %v1827 = vunpack.c.l.b16 %v1810
    %v1828 = vunpack.c.l.b16 %v1811
    %v1829 = vpack.c.b16 %v1822, %v1821
    %v1830 = vpack.c.b16 %v1824, %v1823
    %v1831 = vpack.c.b16 %v1826, %v1825
    %v1832 = vpack.c.b16 %v1828, %v1827
    %v1838 = vsel %vm441, %v1812, 0
    %1840 = vmatprep.subr.bf16.mxu0 0
    %1841 = vmatpush1.bf16.msra.mxu0 %v1829
    %1842 = vmatprep.subr.bf16.mxu0 0
    %1843 = vmatpush1.bf16.msra.mxu0 %v1830
    %1844 = vmatprep.subr.bf16.mxu0 0
    %1845 = vmatpush1.bf16.msra.mxu0 %v1831
    %1846 = vmatprep.subr.bf16.mxu0 0
    %1847 = vmatpush1.bf16.msra.mxu0 %v1832
    %1848 = vmatprep.subr.bf16.mxu0 0
    %1849 = vmatpush1.bf16.msra.mxu0 0
    %1850 = vmatprep.subr.bf16.mxu0 0
    %1851 = vmatpush1.bf16.msra.mxu0 0
    %1852 = vmatprep.subr.bf16.mxu0 0
    %1853 = vmatpush1.bf16.msra.mxu0 0
    %1854 = vmatprep.subr.bf16.mxu0 0
    %1855 = vmatpush1.bf16.msra.mxu0 0
    %1856 = vmatprep.subr.bf16.mxu0 0
    %1857 = vmatpush1.bf16.msra.mxu0 0
    %1858 = vmatprep.subr.bf16.mxu0 0
    %1859 = vmatpush1.bf16.msra.mxu0 0
    %1860 = vmatprep.subr.bf16.mxu0 0
    %1861 = vmatpush1.bf16.msra.mxu0 0
    %1862 = vmatprep.subr.bf16.mxu0 0
    %1863 = vmatpush1.bf16.msra.mxu0 0
    %1864 = vmatprep.subr.bf16.mxu0 0
    %1865 = vmatpush1.bf16.msra.mxu0 0
    %1866 = vmatprep.subr.bf16.mxu0 0
    %1867 = vmatpush1.bf16.msra.mxu0 0
    %1868 = vmatprep.subr.bf16.mxu0 0
    %1869 = vmatpush1.bf16.msra.mxu0 0
    %1870 = vmatprep.subr.bf16.mxu0 0
    %1871 = vmatpush1.bf16.msra.mxu0 0
    %1872 = vmatprep.mubr.bf16.mxu0 0
    %1873 = vmatmul.mubr.bf16.gmra.mrb[0].mxu0 %v1838
    %v1874 = vpop.f32.mrb[0].mxu0
    %v1875 = vadd.f32 %v1643, %v1874
    %v1876 = vpop.f32.mrb[0].mxu0
    %v1877 = vpop.f32.mrb[0].mxu0
    %v1878 = vpop.f32.mrb[0].mxu0
    %1879 = vdwg.mxu0
    %s1880 = scalar_lea.vmem [#allocation5], 96
    %v1881 = vld [vmem:[%s1880] sm:$0xf]
    %v1882 = vld [vmem:[%s1880 + $0xc] sm:$0xf]
    %v1883 = vld [vmem:[%s1880 + $0x18] sm:$0xf]
    %v1884 = vld [vmem:[%s1880 + $0x24] sm:$0xf]
    %v1885 = vpack.c.bf16 %v1640, %v1640
    %v1890 = vunpack.c.l.b16 %v1881
    %v1891 = vunpack.c.l.b16 %v1882
    %v1892 = vunpack.c.l.b16 %v1883
    %v1893 = vunpack.c.l.b16 %v1884
    %v1894 = vpack.c.b16 %v1891, %v1890
    %v1895 = vpack.c.b16 %v1893, %v1892
    %v1899 = vsel %vm661, %v1885, 0
    %1901 = vmatprep.subr.bf16.mxu0 0
    %1902 = vmatpush1.bf16.msra.mxu0 %v1894
    %1903 = vmatprep.subr.bf16.mxu0 0
    %1904 = vmatpush1.bf16.msra.mxu0 %v1895
    %1905 = vmatprep.subr.bf16.mxu0 0
    %1906 = vmatpush1.bf16.msra.mxu0 0
    %1907 = vmatprep.subr.bf16.mxu0 0
    %1908 = vmatpush1.bf16.msra.mxu0 0
    %1909 = vmatprep.subr.bf16.mxu0 0
    %1910 = vmatpush1.bf16.msra.mxu0 0
    %1911 = vmatprep.subr.bf16.mxu0 0
    %1912 = vmatpush1.bf16.msra.mxu0 0
    %1913 = vmatprep.subr.bf16.mxu0 0
    %1914 = vmatpush1.bf16.msra.mxu0 0
    %1915 = vmatprep.subr.bf16.mxu0 0
    %1916 = vmatpush1.bf16.msra.mxu0 0
    %1917 = vmatprep.subr.bf16.mxu0 0
    %1918 = vmatpush1.bf16.msra.mxu0 0
    %1919 = vmatprep.subr.bf16.mxu0 0
    %1920 = vmatpush1.bf16.msra.mxu0 0
    %1921 = vmatprep.subr.bf16.mxu0 0
    %1922 = vmatpush1.bf16.msra.mxu0 0
    %1923 = vmatprep.subr.bf16.mxu0 0
    %1924 = vmatpush1.bf16.msra.mxu0 0
    %1925 = vmatprep.subr.bf16.mxu0 0
    %1926 = vmatpush1.bf16.msra.mxu0 0
    %1927 = vmatprep.subr.bf16.mxu0 0
    %1928 = vmatpush1.bf16.msra.mxu0 0
    %1929 = vmatprep.subr.bf16.mxu0 0
    %1930 = vmatpush1.bf16.msra.mxu0 0
    %1931 = vmatprep.subr.bf16.mxu0 0
    %1932 = vmatpush1.bf16.msra.mxu0 0
    %1933 = vmatprep.mubr.bf16.mxu0 0
    %1934 = vmatmul.mubr.bf16.gmra.mrb[0].mxu0 %v1899
    %v1935 = vpop.f32.mrb[0].mxu0
    %v1936 = vadd.f32 0.0, %v1935
    %v1937 = vpop.f32.mrb[0].mxu0
    %v1938 = vpop.f32.mrb[0].mxu0
    %v1939 = vpop.f32.mrb[0].mxu0
    %1940 = vdwg.mxu0
    %v1941 = vmul.f32 %v1936, %v1936
    %v1943 = vrot.slane %v1941, 2
    %v1945 = vadd.f32 %v1941, %v1943
    %v1946 = vrot.slane %v1941, 4
    %v1948 = vadd.f32 %v1945, %v1946
    %v1949 = vrsqrt.pop %v1948
    %v1950 = vmul.f32 %v1948, %v1949
    %vm1951 = vcmp.eq.f32.partialorder %v1948, inf
    %v1952 = vsel %vm1951, %v1948, %v1950
    %vm1953 = vcmp.eq.f32.partialorder %v1948, 0.0
    %v1954 = vand.u32 %v1948, 2147483648
    %v1955 = vsel %vm1953, %v1954, %v1952
    %v1956 = vadd.f32 %v1955, 1.0
    %v1957 = vrsqrt.pop %v1956
    %v1959 = vrot.slane %v1957, 6
    %v1961 = vrot.slane %v1957, 4
    %v1963 = vsel %vm105, %v1957, %v1959
    %v1964 = vsel %vm107, %v1963, %v1961
    %v1965 = vmul.f32 %v1936, %v1964
    %v1966 = vld [vmem:[%s1880 + $0x4] sm:$0xf]
    %v1967 = vld [vmem:[%s1880 + $0x10] sm:$0xf]
    %v1968 = vld [vmem:[%s1880 + $0x1c] sm:$0xf]
    %v1969 = vld [vmem:[%s1880 + $0x28] sm:$0xf]
    %v1970 = vpack.c.bf16 %v1965, %v1965
    %v1975 = vunpack.c.l.b16 %v1966
    %v1976 = vunpack.c.l.b16 %v1967
    %v1977 = vunpack.c.l.b16 %v1968
    %v1978 = vunpack.c.l.b16 %v1969
    %v1979 = vpack.c.b16 %v1976, %v1975
    %v1980 = vpack.c.b16 %v1978, %v1977
    %v1984 = vsel %vm661, %v1970, 0
    %1986 = vmatprep.subr.bf16.mxu0 0
    %1987 = vmatpush1.bf16.msra.mxu0 %v1979
    %1988 = vmatprep.subr.bf16.mxu0 0
    %1989 = vmatpush1.bf16.msra.mxu0 %v1980
    %1990 = vmatprep.subr.bf16.mxu0 0
    %1991 = vmatpush1.bf16.msra.mxu0 0
    %1992 = vmatprep.subr.bf16.mxu0 0
    %1993 = vmatpush1.bf16.msra.mxu0 0
    %1994 = vmatprep.subr.bf16.mxu0 0
    %1995 = vmatpush1.bf16.msra.mxu0 0
    %1996 = vmatprep.subr.bf16.mxu0 0
    %1997 = vmatpush1.bf16.msra.mxu0 0
    %1998 = vmatprep.subr.bf16.mxu0 0
    %1999 = vmatpush1.bf16.msra.mxu0 0
    %2000 = vmatprep.subr.bf16.mxu0 0
    %2001 = vmatpush1.bf16.msra.mxu0 0
    %2002 = vmatprep.subr.bf16.mxu0 0
    %2003 = vmatpush1.bf16.msra.mxu0 0
    %2004 = vmatprep.subr.bf16.mxu0 0
    %2005 = vmatpush1.bf16.msra.mxu0 0
    %2006 = vmatprep.subr.bf16.mxu0 0
    %2007 = vmatpush1.bf16.msra.mxu0 0
    %2008 = vmatprep.subr.bf16.mxu0 0
    %2009 = vmatpush1.bf16.msra.mxu0 0
    %2010 = vmatprep.subr.bf16.mxu0 0
    %2011 = vmatpush1.bf16.msra.mxu0 0
    %2012 = vmatprep.subr.bf16.mxu0 0
    %2013 = vmatpush1.bf16.msra.mxu0 0
    %2014 = vmatprep.subr.bf16.mxu0 0
    %2015 = vmatpush1.bf16.msra.mxu0 0
    %2016 = vmatprep.subr.bf16.mxu0 0
    %2017 = vmatpush1.bf16.msra.mxu0 0
    %2018 = vmatprep.mubr.bf16.mxu0 0
    %2019 = vmatmul.mubr.bf16.gmra.mrb[0].mxu0 %v1984
    %v2020 = vpop.f32.mrb[0].mxu0
    %v2021 = vadd.f32 0.0, %v2020
    %v2022 = vpop.f32.mrb[0].mxu0
    %v2023 = vpop.f32.mrb[0].mxu0
    %v2024 = vpop.f32.mrb[0].mxu0
    %2025 = vdwg.mxu0
    %v2026 = vmul.f32 %v2021, %v2021
    %v2028 = vrot.slane %v2026, 2
    %v2030 = vadd.f32 %v2026, %v2028
    %v2031 = vrot.slane %v2026, 4
    %v2033 = vadd.f32 %v2030, %v2031
    %v2034 = vrsqrt.pop %v2033
    %v2035 = vmul.f32 %v2033, %v2034
    %vm2036 = vcmp.eq.f32.partialorder %v2033, inf
    %v2037 = vsel %vm2036, %v2033, %v2035
    %vm2038 = vcmp.eq.f32.partialorder %v2033, 0.0
    %v2039 = vand.u32 %v2033, 2147483648
    %v2040 = vsel %vm2038, %v2039, %v2037
    %v2041 = vadd.f32 %v2040, 1.0
    %v2042 = vrsqrt.pop %v2041
    %v2044 = vrot.slane %v2042, 6
    %v2046 = vrot.slane %v2042, 4
    %v2048 = vsel %vm105, %v2042, %v2044
    %v2049 = vsel %vm107, %v2048, %v2046
    %v2050 = vmul.f32 %v2021, %v2049
    %v2051 = vld [vmem:[%s1880 + $0x8] sm:$0xf]
    %v2052 = vld [vmem:[%s1880 + $0x14] sm:$0xf]
    %v2053 = vld [vmem:[%s1880 + $0x20] sm:$0xf]
    %v2054 = vld [vmem:[%s1880 + $0x2c] sm:$0xf]
    %v2055 = vpack.c.bf16 %v2050, %v2050
    %2057 = vrot.lane.b32.xlu0 %v1936, 112
    %v2058 = vpop.permute.xlu0 %2057
    %v2060 = vmul.f32 %v1936, %v2058
    %v2062 = vrot.slane %v2060, 2
    %v2064 = vadd.f32 %v2060, %v2062
    %v2065 = vrot.slane %v2060, 4
    %v2067 = vadd.f32 %v2064, %v2065
    %2069 = vrot.lane.b32.xlu0 %v1716, 112
    %v2070 = vpop.permute.xlu0 %2069
    %v2072 = vmul.f32 %v1716, %v2070
    %2074 = vrot.lane.b32.xlu0 %v2067, 32
    %v2075 = vpop.permute.xlu0 %2074
    %v2077 = vadd.f32 %v2072, %v2075
    %s2078 = scalar_lea.vmem [#allocation7], 32
    %v2079 = vld [vmem:[%s2078] sm:$0xf]
    %v2080 = vld [vmem:[%s2078 + $0x8] sm:$0xf]
    %v2081 = vpack.c.bf16 %v2077, %v2077
    %2083 = vrot.lane.b32.xlu0 %v2081, 64
    %v2084 = vpop.permute.xlu0 %2083
    %v2087 = vunpack.c.l.b16 %v2079
    %v2088 = vunpack.c.l.b16 %v2080
    %v2089 = vpack.c.b16 %v2088, %v2087
    %v2092 = vsel %vm854, %v2084, 0
    %2094 = vmatprep.subr.bf16.mxu0 0
    %2095 = vmatpush1.bf16.msra.mxu0 %v2089
    %2096 = vmatprep.subr.bf16.mxu0 0
    %2097 = vmatpush1.bf16.msra.mxu0 0
    %2098 = vmatprep.subr.bf16.mxu0 0
    %2099 = vmatpush1.bf16.msra.mxu0 0
    %2100 = vmatprep.subr.bf16.mxu0 0
    %2101 = vmatpush1.bf16.msra.mxu0 0
    %2102 = vmatprep.subr.bf16.mxu0 0
    %2103 = vmatpush1.bf16.msra.mxu0 0
    %2104 = vmatprep.subr.bf16.mxu0 0
    %2105 = vmatpush1.bf16.msra.mxu0 0
    %2106 = vmatprep.subr.bf16.mxu0 0
    %2107 = vmatpush1.bf16.msra.mxu0 0
    %2108 = vmatprep.subr.bf16.mxu0 0
    %2109 = vmatpush1.bf16.msra.mxu0 0
    %2110 = vmatprep.subr.bf16.mxu0 0
    %2111 = vmatpush1.bf16.msra.mxu0 0
    %2112 = vmatprep.subr.bf16.mxu0 0
    %2113 = vmatpush1.bf16.msra.mxu0 0
    %2114 = vmatprep.subr.bf16.mxu0 0
    %2115 = vmatpush1.bf16.msra.mxu0 0
    %2116 = vmatprep.subr.bf16.mxu0 0
    %2117 = vmatpush1.bf16.msra.mxu0 0
    %2118 = vmatprep.subr.bf16.mxu0 0
    %2119 = vmatpush1.bf16.msra.mxu0 0
    %2120 = vmatprep.subr.bf16.mxu0 0
    %2121 = vmatpush1.bf16.msra.mxu0 0
    %2122 = vmatprep.subr.bf16.mxu0 0
    %2123 = vmatpush1.bf16.msra.mxu0 0
    %2124 = vmatprep.subr.bf16.mxu0 0
    %2125 = vmatpush1.bf16.msra.mxu0 0
    %2126 = vmatprep.mubr.bf16.mxu0 0
    %2127 = vmatmul.mubr.bf16.gmra.mrb[0].mxu0 %v2092
    %v2128 = vpop.f32.mrb[0].mxu0
    %v2129 = vadd.f32 0.0, %v2128
    %v2130 = vpop.f32.mrb[0].mxu0
    %v2131 = vpop.f32.mrb[0].mxu0
    %v2132 = vpop.f32.mrb[0].mxu0
    %2133 = vdwg.mxu0
    %v2134 = vrot.slane %v1716, 6
    %v2136 = vrot.slane %v1716, 4
    %v2138 = vsel %vm105, %v1716, %v2134
    %v2139 = vsel %vm107, %v2138, %v2136
    %2140 = vrot.lane.b32.xlu0 %v1936, 16
    %v2141 = vpop.permute.xlu0 %2140
    %v2143 = vmul.f32 %v2139, %v2141
    %v2144 = vld [vmem:[%s2078 + $0x4] sm:$0xf]
    %v2145 = vld [vmem:[%s2078 + $0xc] sm:$0xf]
    %v2146 = vpack.c.bf16 %v2143, %v2143
    %2148 = vrot.lane.b32.xlu0 %v2146, 64
    %v2149 = vpop.permute.xlu0 %2148
    %v2152 = vunpack.c.l.b16 %v2144
    %v2153 = vunpack.c.l.b16 %v2145
    %v2154 = vpack.c.b16 %v2153, %v2152
    %v2157 = vsel %vm854, %v2149, 0
    %2159 = vmatprep.subr.bf16.mxu0 0
    %2160 = vmatpush1.bf16.msra.mxu0 %v2154
    %2161 = vmatprep.subr.bf16.mxu0 0
    %2162 = vmatpush1.bf16.msra.mxu0 0
    %2163 = vmatprep.subr.bf16.mxu0 0
    %2164 = vmatpush1.bf16.msra.mxu0 0
    %2165 = vmatprep.subr.bf16.mxu0 0
    %2166 = vmatpush1.bf16.msra.mxu0 0
    %2167 = vmatprep.subr.bf16.mxu0 0
    %2168 = vmatpush1.bf16.msra.mxu0 0
    %2169 = vmatprep.subr.bf16.mxu0 0
    %2170 = vmatpush1.bf16.msra.mxu0 0
    %2171 = vmatprep.subr.bf16.mxu0 0
    %2172 = vmatpush1.bf16.msra.mxu0 0
    %2173 = vmatprep.subr.bf16.mxu0 0
    %2174 = vmatpush1.bf16.msra.mxu0 0
    %2175 = vmatprep.subr.bf16.mxu0 0
    %2176 = vmatpush1.bf16.msra.mxu0 0
    %2177 = vmatprep.subr.bf16.mxu0 0
    %2178 = vmatpush1.bf16.msra.mxu0 0
    %2179 = vmatprep.subr.bf16.mxu0 0
    %2180 = vmatpush1.bf16.msra.mxu0 0
    %2181 = vmatprep.subr.bf16.mxu0 0
    %2182 = vmatpush1.bf16.msra.mxu0 0
    %2183 = vmatprep.subr.bf16.mxu0 0
    %2184 = vmatpush1.bf16.msra.mxu0 0
    %2185 = vmatprep.subr.bf16.mxu0 0
    %2186 = vmatpush1.bf16.msra.mxu0 0
    %2187 = vmatprep.subr.bf16.mxu0 0
    %2188 = vmatpush1.bf16.msra.mxu0 0
    %2189 = vmatprep.subr.bf16.mxu0 0
    %2190 = vmatpush1.bf16.msra.mxu0 0
    %2191 = vmatprep.mubr.bf16.mxu0 0
    %2192 = vmatmul.mubr.bf16.gmra.mrb[0].mxu0 %v2157
    %v2193 = vpop.f32.mrb[0].mxu0
    %v2194 = vadd.f32 0.0, %v2193
    %v2195 = vpop.f32.mrb[0].mxu0
    %v2196 = vpop.f32.mrb[0].mxu0
    %v2197 = vpop.f32.mrb[0].mxu0
    %2198 = vdwg.mxu0
    %v2199 = vadd.f32 %v1875, %v2129
    %v2200 = vmul.f32 %v2199, 0.5
    %v2201 = vadd.f32 %v1583, %v2200
    %v2206 = vunpack.c.l.b16 %v2051
    %v2207 = vunpack.c.l.b16 %v2052
    %v2208 = vunpack.c.l.b16 %v2053
    %v2209 = vunpack.c.l.b16 %v2054
    %v2210 = vpack.c.b16 %v2207, %v2206
    %v2211 = vpack.c.b16 %v2209, %v2208
    %v2215 = vsel %vm661, %v2055, 0
    %2217 = vmatprep.subr.bf16.mxu0 0
    %2218 = vmatpush1.bf16.msra.mxu0 %v2210
    %2219 = vmatprep.subr.bf16.mxu0 0
    %2220 = vmatpush1.bf16.msra.mxu0 %v2211
    %2221 = vmatprep.subr.bf16.mxu0 0
    %2222 = vmatpush1.bf16.msra.mxu0 0
    %2223 = vmatprep.subr.bf16.mxu0 0
    %2224 = vmatpush1.bf16.msra.mxu0 0
    %2225 = vmatprep.subr.bf16.mxu0 0
    %2226 = vmatpush1.bf16.msra.mxu0 0
    %2227 = vmatprep.subr.bf16.mxu0 0
    %2228 = vmatpush1.bf16.msra.mxu0 0
    %2229 = vmatprep.subr.bf16.mxu0 0
    %2230 = vmatpush1.bf16.msra.mxu0 0
    %2231 = vmatprep.subr.bf16.mxu0 0
    %2232 = vmatpush1.bf16.msra.mxu0 0
    %2233 = vmatprep.subr.bf16.mxu0 0
    %2234 = vmatpush1.bf16.msra.mxu0 0
    %2235 = vmatprep.subr.bf16.mxu0 0
    %2236 = vmatpush1.bf16.msra.mxu0 0
    %2237 = vmatprep.subr.bf16.mxu0 0
    %2238 = vmatpush1.bf16.msra.mxu0 0
    %2239 = vmatprep.subr.bf16.mxu0 0
    %2240 = vmatpush1.bf16.msra.mxu0 0
    %2241 = vmatprep.subr.bf16.mxu0 0
    %2242 = vmatpush1.bf16.msra.mxu0 0
    %2243 = vmatprep.subr.bf16.mxu0 0
    %2244 = vmatpush1.bf16.msra.mxu0 0
    %2245 = vmatprep.subr.bf16.mxu0 0
    %2246 = vmatpush1.bf16.msra.mxu0 0
    %2247 = vmatprep.subr.bf16.mxu0 0
    %2248 = vmatpush1.bf16.msra.mxu0 0
    %2249 = vmatprep.mubr.bf16.mxu0 0
    %2250 = vmatmul.mubr.bf16.gmra.mrb[0].mxu0 %v2215
    %v2251 = vpop.f32.mrb[0].mxu0
    %v2252 = vadd.f32 %v2194, %v2251
    %v2253 = vpop.f32.mrb[0].mxu0
    %v2254 = vpop.f32.mrb[0].mxu0
    %v2255 = vpop.f32.mrb[0].mxu0
    %2256 = vdwg.mxu0
    %v2257 = vmul.f32 %v2252, 0.05
    %v2258 = vadd.f32 %v1640, %v2257
    %v2259 = vmul.f32 %v2258, %v2258
    %v2261 = vrot.slane %v2259, 2
    %v2263 = vadd.f32 %v2259, %v2261
    %v2264 = vrot.slane %v2259, 4
    %v2266 = vadd.f32 %v2263, %v2264
    %v2267 = vrsqrt.pop %v2266
    %v2268 = vmul.f32 %v2266, %v2267
    %vm2269 = vcmp.eq.f32.partialorder %v2266, inf
    %v2270 = vsel %vm2269, %v2266, %v2268
    %vm2271 = vcmp.eq.f32.partialorder %v2266, 0.0
    %v2272 = vand.u32 %v2266, 2147483648
    %v2273 = vsel %vm2271, %v2272, %v2270
    %2275 = vrot.lane.b32.xlu0 %v2273, 64
    %v2276 = vpop.permute.xlu0 %2275
    %v2278 = vsel %vm441, %v2201, %v2276
    %v2279 = vld [vmem:[%s6] sm:$0xf]
    %v2280 = vld [vmem:[%s6 + $0x4] sm:$0xf]
    %v2281 = vld [vmem:[%s6 + $0x8] sm:$0xf]
    %v2282 = vld [vmem:[%s6 + $0xc] sm:$0xf]
    %v2283 = vld [vmem:[%s6 + $0x10] sm:$0xf]
    %v2284 = vld [vmem:[%s6 + $0x14] sm:$0xf]
    %v2285 = vld [vmem:[%s6 + $0x18] sm:$0xf]
    %v2286 = vld [vmem:[%s6 + $0x1c] sm:$0xf]
    %v2287 = vld [vmem:[%s6 + $0x20] sm:$0xf]
    %v2288 = vld [vmem:[%s6 + $0x24] sm:$0xf]
    %v2289 = vld [vmem:[%s6 + $0x28] sm:$0xf]
    %v2290 = vld [vmem:[%s6 + $0x2c] sm:$0xf]
    %v2291 = vpack.c.bf16 %v2278, %v2278
    %v2292 = vld [vmem:[#allocation8 + $0x13] ss:$0 sm:$0xff]
    %v2305 = vunpack.c.l.b16 %v2279
    %v2306 = vunpack.c.l.b16 %v2280
    %v2307 = vunpack.c.l.b16 %v2281
    %v2308 = vunpack.c.l.b16 %v2282
    %v2309 = vunpack.c.l.b16 %v2283
    %v2310 = vunpack.c.l.b16 %v2284
    %v2311 = vunpack.c.l.b16 %v2285
    %v2312 = vunpack.c.l.b16 %v2286
    %v2313 = vunpack.c.l.b16 %v2287
    %v2314 = vunpack.c.l.b16 %v2288
    %v2315 = vunpack.c.l.b16 %v2289
    %v2316 = vunpack.c.l.b16 %v2290
    %v2317 = vpack.c.b16 %v2306, %v2305
    %v2318 = vpack.c.b16 %v2308, %v2307
    %v2319 = vpack.c.b16 %v2310, %v2309
    %v2320 = vpack.c.b16 %v2312, %v2311
    %v2321 = vpack.c.b16 %v2314, %v2313
    %v2322 = vpack.c.b16 %v2316, %v2315
    %vm2329 = vcmask 785408
    %v2331 = vsel %vm2329, %v2291, 0
    %2333 = vmatprep.subr.bf16.mxu0 0
    %2334 = vmatpush1.bf16.msra.mxu0 %v2317
    %2335 = vmatprep.subr.bf16.mxu0 0
    %2336 = vmatpush1.bf16.msra.mxu0 %v2318
    %2337 = vmatprep.subr.bf16.mxu0 0
    %2338 = vmatpush1.bf16.msra.mxu0 %v2319
    %2339 = vmatprep.subr.bf16.mxu0 0
    %2340 = vmatpush1.bf16.msra.mxu0 %v2320
    %2341 = vmatprep.subr.bf16.mxu0 0
    %2342 = vmatpush1.bf16.msra.mxu0 %v2321
    %2343 = vmatprep.subr.bf16.mxu0 0
    %2344 = vmatpush1.bf16.msra.mxu0 %v2322
    %2345 = vmatprep.subr.bf16.mxu0 0
    %2346 = vmatpush1.bf16.msra.mxu0 0
    %2347 = vmatprep.subr.bf16.mxu0 0
    %2348 = vmatpush1.bf16.msra.mxu0 0
    %2349 = vmatprep.subr.bf16.mxu0 0
    %2350 = vmatpush1.bf16.msra.mxu0 0
    %2351 = vmatprep.subr.bf16.mxu0 0
    %2352 = vmatpush1.bf16.msra.mxu0 0
    %2353 = vmatprep.subr.bf16.mxu0 0
    %2354 = vmatpush1.bf16.msra.mxu0 0
    %2355 = vmatprep.subr.bf16.mxu0 0
    %2356 = vmatpush1.bf16.msra.mxu0 0
    %2357 = vmatprep.subr.bf16.mxu0 0
    %2358 = vmatpush1.bf16.msra.mxu0 0
    %2359 = vmatprep.subr.bf16.mxu0 0
    %2360 = vmatpush1.bf16.msra.mxu0 0
    %2361 = vmatprep.subr.bf16.mxu0 0
    %2362 = vmatpush1.bf16.msra.mxu0 0
    %2363 = vmatprep.subr.bf16.mxu0 0
    %2364 = vmatpush1.bf16.msra.mxu0 0
    %2365 = vmatprep.mubr.bf16.mxu0 0
    %2366 = vmatmul.mubr.bf16.gmra.mrb[0].mxu0 %v2331
    %v2367 = vpop.f32.mrb[0].mxu0
    %v2368 = vadd.f32 %v2292, %v2367
    %v2369 = vpop.f32.mrb[0].mxu0
    %v2370 = vpop.f32.mrb[0].mxu0
    %v2371 = vpop.f32.mrb[0].mxu0
    %2372 = vdwg.mxu0
    %vm2373 = vcmask 9216
    %2374 = vst.msk [vmem:[#allocation10] sm:$0x3] %vm2373, %v2368
    // Predicated region
    $region50: #{discriminator_forward.1} parent=1 // pred_check
      _
    $region51: #{discriminator_forward.1} parent=1 // pred_check_branch
      %2376 = sbr.rel (0) target = $region53
    $region52: #{discriminator_forward.1} parent=1 // pred_region
      %s2378 = ssub.s32 32, 32
      %2379 = vsyncadd [#allocation4], %s2378
      %s2381 = sshll.u32 [#allocation10], 4
      %s2382 = int_to_ptr.vmem [resolvable:$true] %s2381
      %2384 = dma.vmem_to_hbm [thread:$0]  %s2382, 32, %s8, [#allocation4]
    $region53: #{discriminator_forward.1} parent=1 // pred_fallthru
      _
    // Predicated region
    $region54: #{discriminator_forward.1} parent=1 // pred_check
      _
    $region55: #{discriminator_forward.1} parent=1 // pred_check_branch
      %2386 = sbr.rel (0) target = $region57
    $region56: #{discriminator_forward.1} parent=1 // pred_region
      %2387 = dma.done [#allocation4], 32
    $region57: #{discriminator_forward.1} parent=1 // pred_fallthru
      _
    %2388 = vsyncpa [#allocation3], 1
    %2389 = vsyncpa [#allocation6], 1
    %2390 = vsyncpa [#allocation9], 1
    %2391 = vsyncpa [#allocation4], 1

</llo_original>
